<compile_context>
chip_gen: v7x
topology: tpu7x:2x2x1
jax: 0.10.0
libtpu: 0.0.40
codegen_flags: <defaults>
</compile_context>

<pallas_src>
import numpy as np
import jax
import jax.numpy as jnp
from jax import lax
from jax.experimental import pallas as pl
from jax.experimental.pallas import tpu as pltpu


# Stride-2 selection matrix for pool2 compaction: column p = zy*8 + zx picks
# row n = 32*zy + 2*zx of the 16x16 (row-major) conv2/pool grid.
_nn = np.arange(256)[:, None]
_pp = np.arange(64)[None, :]
_S2 = (_nn == 32 * (_pp // 8) + 2 * (_pp % 8)).astype(np.float32)


def _convnet_kernel(p1_ref, w1_ref, b1_ref, w2_ref, b2_ref, s2_ref,
                    wf1_ref, bf1_ref, wf2_ref, bf2_ref, o_ref):
    """Fused forward pass for one batch element (grid axis = batch).

    p1_ref : (1, 27, 1024) conv1 im2col patches, columns = (pool-phase, yp, xq)
    w1_ref : (16, 27)   conv1 weight, cols = c*9 + ky*3 + kx
    w2_ref : (8, 144)   conv2 weight, cols = (ky*3 + kx)*16 + c
    s2_ref : (256, 64)  0/1 stride-2 selection matrix (pool2 compaction)
    wf1_ref: (8, 64, 32) fc1 weight reshaped per input channel
    o_ref  : (1, 1, 2)  log-softmax output
    """
    # ---- conv1: one (16,27)@(27,1024) matmul covers all 4 pool phases.
    # Columns are phase-grouped, so the 2x2 max-pool is a max over four
    # 256-wide lane slices; bias + tanh applied ONCE after the max.
    c1 = jnp.dot(w1_ref[...], p1_ref[0], preferred_element_type=jnp.float32)
    m1 = jnp.maximum(jnp.maximum(c1[:, 0:256], c1[:, 256:512]),
                     jnp.maximum(c1[:, 512:768], c1[:, 768:1024]))
    y1 = jnp.tanh(m1 + b1_ref[...])                     # (16, 256): 16x16 grid

    # ---- conv2: im2col in-register via lane rolls + border (padding) masks.
    col = lax.broadcasted_iota(jnp.int32, (1, 256), 1)
    yy = jnp.right_shift(col, 4)                        # row    = n // 16
    xx = jnp.bitwise_and(col, 15)                       # column = n % 16
    pieces = []
    for dy in (-1, 0, 1):
        for dx in (-1, 0, 1):
            shifted = pltpu.roll(y1, shift=(-(dy * 16 + dx)) % 256, axis=1)
            valid = ((yy >= -dy) & (yy < 16 - dy) &
                     (xx >= -dx) & (xx < 16 - dx))
            pieces.append(jnp.where(valid, shifted, 0.0))
    patches2 = jnp.concatenate(pieces, axis=0)          # (144, 256)
    c2 = jnp.dot(w2_ref[...], patches2,
                 preferred_element_type=jnp.float32)    # (8, 256)

    # ---- pool2: 2x2 max via rolls (valid at even (y,x)), stride-2 compaction
    # as a selection matmul, then one bias add + tanh.
    m2 = jnp.maximum(jnp.maximum(c2, pltpu.roll(c2, shift=255, axis=1)),
                     jnp.maximum(pltpu.roll(c2, shift=240, axis=1),
                                 pltpu.roll(c2, shift=239, axis=1)))
    y2 = jnp.tanh(jnp.dot(m2, s2_ref[...],
                          preferred_element_type=jnp.float32)
                  + b2_ref[...])                        # (8, 64) channel-major

    # ---- head: fc1 + tanh + fc2 + log-softmax.  fc1 contracts channel by
    # channel ((1,64)@(64,32) x 8) so (8,64) never needs a lane relayout.
    h = jnp.dot(y2[0:1, :], wf1_ref[0], preferred_element_type=jnp.float32)
    for c in range(1, 8):
        h = h + jnp.dot(y2[c:c + 1, :], wf1_ref[c],
                        preferred_element_type=jnp.float32)
    h = jnp.tanh(h + bf1_ref[...])                      # (1, 32)
    logits = jnp.dot(h, wf2_ref[...],
                     preferred_element_type=jnp.float32) + bf2_ref[...]
    s = logits - jnp.max(logits, axis=1, keepdims=True)
    o_ref[0] = s - jnp.log(jnp.sum(jnp.exp(s), axis=1, keepdims=True))


def _phase_patches(x):
    """conv1 im2col, phase-grouped and transposed for a lane-dense matmul.

    x: (B, 3, 32, 32) NCHW.  Returns (B, 27, 1024) where row = c*9 + ky*3 + kx
    and column = ((py*2 + px)*16 + yp)*16 + xq  (pool phase major)."""
    B = x.shape[0]
    xp_ = jnp.pad(x, ((0, 0), (0, 0), (1, 1), (1, 1)))            # (B,3,34,34)
    shifts = jnp.stack([xp_[:, :, ky:ky + 32, kx:kx + 32]
                        for ky in range(3) for kx in range(3)], axis=2)
    t = shifts.reshape(B, 3, 9, 16, 2, 16, 2)     # y = 2*yp+py, x = 2*xq+px
    t = t.transpose(0, 1, 2, 4, 6, 3, 5)          # (B, c, k, py, px, yp, xq)
    return t.reshape(B, 27, 4 * 256)


def convnet_pallas(patches1, w1t, b1, w2t, b2, s2, wf1r, bf1, wf2, bf2):
    B = patches1.shape[0]
    zero2 = lambda b: (0, 0)
    zero3 = lambda b: (0, 0, 0)
    out = pl.pallas_call(
        _convnet_kernel,
        out_shape=jax.ShapeDtypeStruct((B, 1, 2), jnp.float32),
        grid=(B,),
        in_specs=[
            pl.BlockSpec((1, 27, 1024), lambda b: (b, 0, 0)),
            pl.BlockSpec((16, 27), zero2),
            pl.BlockSpec((16, 1), zero2),
            pl.BlockSpec((8, 144), zero2),
            pl.BlockSpec((8, 1), zero2),
            pl.BlockSpec((256, 64), zero2),
            pl.BlockSpec((8, 64, 32), zero3),
            pl.BlockSpec((1, 32), zero2),
            pl.BlockSpec((32, 2), zero2),
            pl.BlockSpec((1, 2), zero2),
        ],
        out_specs=pl.BlockSpec((1, 1, 2), lambda b: (b, 0, 0)),
        compiler_params=pltpu.CompilerParams(
            dimension_semantics=("parallel",)),   # 2-way batch split (v7x 2 TCs)
    )(patches1, w1t, b1, w2t, b2, s2, wf1r, bf1, wf2, bf2)
    return out[:, 0, :]


def init_params(key):
    ks = jax.random.split(key, 8)
    return dict(
        w1=jax.random.normal(ks[0], (16, 3, 3, 3), jnp.float32) * 0.1,
        b1=jax.random.normal(ks[1], (16,), jnp.float32) * 0.1,
        w2=jax.random.normal(ks[2], (8, 16, 3, 3), jnp.float32) * 0.1,
        b2=jax.random.normal(ks[3], (8,), jnp.float32) * 0.1,
        wf1=jax.random.normal(ks[4], (8 * 8 * 8, 32), jnp.float32) * 0.05,
        bf1=jax.random.normal(ks[5], (32,), jnp.float32) * 0.05,
        wf2=jax.random.normal(ks[6], (32, 2), jnp.float32) * 0.1,
        bf2=jax.random.normal(ks[7], (2,), jnp.float32) * 0.1,
    )


@jax.jit
def convnet_forward(x_nchw, params):
    x = x_nchw.astype(jnp.float32)                   # (B, 3, 32, 32) NCHW
    patches1 = _phase_patches(x)                     # (B, 27, 1024)
    w1t = params["w1"].reshape(16, 27)                          # (o, c*9+ky*3+kx)
    w2t = jnp.transpose(params["w2"], (0, 2, 3, 1)).reshape(8, 144)  # (o, (ky*3+kx)*16+c)
    wf1r = params["wf1"].reshape(8, 64, 32)
    return convnet_pallas(
        patches1, w1t, params["b1"].reshape(16, 1),
        w2t, params["b2"].reshape(8, 1),
        jnp.asarray(_S2), wf1r,
        params["bf1"].reshape(1, 32), params["wf2"],
        params["bf2"].reshape(1, 2))


def ref_forward(x_nchw, params):
    """Pure-JAX reference with identical semantics (sanity check)."""
    B = x_nchw.shape[0]
    y = lax.conv_general_dilated(x_nchw, params["w1"], (1, 1), "SAME",
                                 dimension_numbers=("NCHW", "OIHW", "NCHW"))
    y = jnp.tanh(y + params["b1"][None, :, None, None])
    y = y.reshape(B, 16, 16, 2, 16, 2).max(axis=(3, 5))
    y = lax.conv_general_dilated(y, params["w2"], (1, 1), "SAME",
                                 dimension_numbers=("NCHW", "OIHW", "NCHW"))
    y = jnp.tanh(y + params["b2"][None, :, None, None])
    y = y.reshape(B, 8, 8, 2, 8, 2).max(axis=(3, 5))
    flat = y.reshape(B, 8 * 8 * 8)
    h = jnp.tanh(flat @ params["wf1"] + params["bf1"])
    logits = h @ params["wf2"] + params["bf2"]
    return jax.nn.log_softmax(logits, axis=1)


if __name__ == "__main__":
    key = jax.random.PRNGKey(0)
    pkey, xkey = jax.random.split(key)
    params = init_params(pkey)
    # fc1 expects 8*8*8 features -> two 2x pools -> input spatial must be 32.
    x = jax.random.normal(xkey, (2, 3, 32, 32), jnp.float32)

    out = convnet_forward(x, params)
    out = jax.block_until_ready(out)

    ref = ref_forward(x, params)
    assert out.shape == (2, 2)
    np.testing.assert_allclose(np.asarray(out), np.asarray(ref),
                               atol=2e-2, rtol=2e-2)
    print("KERNEL_OK")
</pallas_src>

<mosaic_0001>
module attributes {stable_mosaic.version = 11 : i64} {
  func.func @_convnet_kernel(%arg0: i32, %arg1: memref<1x27x1024xf32, #tpu.memory_space<vmem>>, %arg2: memref<16x27xf32, #tpu.memory_space<vmem>>, %arg3: memref<16x1xf32, #tpu.memory_space<vmem>>, %arg4: memref<8x144xf32, #tpu.memory_space<vmem>>, %arg5: memref<8x1xf32, #tpu.memory_space<vmem>>, %arg6: memref<256x64xf32, #tpu.memory_space<vmem>>, %arg7: memref<8x64x32xf32, #tpu.memory_space<vmem>>, %arg8: memref<1x32xf32, #tpu.memory_space<vmem>>, %arg9: memref<32x2xf32, #tpu.memory_space<vmem>>, %arg10: memref<1x2xf32, #tpu.memory_space<vmem>>, %arg11: memref<1x1x2xf32, #tpu.memory_space<vmem>>) attributes {dimension_semantics = [#tpu.dimension_semantics<parallel>], iteration_bounds = array<i64: 2>, scalar_prefetch = 0 : i64, scratch_operands = 0 : i64, tpu.core_type = #tpu.core_type<tc>, window_params = [{transform_indices = @transform_0, window_bounds = array<i64: 1, 27, 1024>}, {pipeline_mode = #tpu.pipeline_mode<synchronous>, transform_indices = @transform_1, window_bounds = array<i64: 16, 27>}, {pipeline_mode = #tpu.pipeline_mode<synchronous>, transform_indices = @transform_2, window_bounds = array<i64: 16, 1>}, {pipeline_mode = #tpu.pipeline_mode<synchronous>, transform_indices = @transform_3, window_bounds = array<i64: 8, 144>}, {pipeline_mode = #tpu.pipeline_mode<synchronous>, transform_indices = @transform_4, window_bounds = array<i64: 8, 1>}, {pipeline_mode = #tpu.pipeline_mode<synchronous>, transform_indices = @transform_5, window_bounds = array<i64: 256, 64>}, {pipeline_mode = #tpu.pipeline_mode<synchronous>, transform_indices = @transform_6, window_bounds = array<i64: 8, 64, 32>}, {pipeline_mode = #tpu.pipeline_mode<synchronous>, transform_indices = @transform_7, window_bounds = array<i64: 1, 32>}, {pipeline_mode = #tpu.pipeline_mode<synchronous>, transform_indices = @transform_8, window_bounds = array<i64: 32, 2>}, {pipeline_mode = #tpu.pipeline_mode<synchronous>, transform_indices = @transform_9, window_bounds = array<i64: 1, 2>}, {transform_indices = @transform_10, window_bounds = array<i64: 1, 1, 2>}]} {
    %c0 = arith.constant 0 : index
    %c0_0 = arith.constant 0 : index
    %0 = vector.load %arg2[%c0, %c0_0] : memref<16x27xf32, #tpu.memory_space<vmem>>, vector<16x27xf32>
    %c0_1 = arith.constant 0 : index
    %c0_2 = arith.constant 0 : index
    %c0_3 = arith.constant 0 : index
    %1 = vector.load %arg1[%c0_1, %c0_2, %c0_3] : memref<1x27x1024xf32, #tpu.memory_space<vmem>>, vector<1x27x1024xf32>
    %2 = vector.shape_cast %1 : vector<1x27x1024xf32> to vector<27x1024xf32>
    %cst = arith.constant dense<0.000000e+00> : vector<16x1024xf32>
    %3 = tpu.matmul %0, %2, %cst {dimension_numbers = #tpu.dot_dimension_numbers<[1], [0], [0], [1], [0, 0, 1, 1], [], []>} : vector<16x27xf32>, vector<27x1024xf32>, vector<16x1024xf32> -> vector<16x1024xf32>
    %4 = vector.extract_strided_slice %3 {offsets = [0, 0], sizes = [16, 256], strides = [1, 1]} : vector<16x1024xf32> to vector<16x256xf32>
    %5 = vector.extract_strided_slice %3 {offsets = [0, 256], sizes = [16, 256], strides = [1, 1]} : vector<16x1024xf32> to vector<16x256xf32>
    %6 = arith.maximumf %4, %5 : vector<16x256xf32>
    %7 = vector.extract_strided_slice %3 {offsets = [0, 512], sizes = [16, 256], strides = [1, 1]} : vector<16x1024xf32> to vector<16x256xf32>
    %8 = vector.extract_strided_slice %3 {offsets = [0, 768], sizes = [16, 256], strides = [1, 1]} : vector<16x1024xf32> to vector<16x256xf32>
    %9 = arith.maximumf %7, %8 : vector<16x256xf32>
    %10 = arith.maximumf %6, %9 : vector<16x256xf32>
    %c0_4 = arith.constant 0 : index
    %c0_5 = arith.constant 0 : index
    %11 = vector.load %arg3[%c0_4, %c0_5] : memref<16x1xf32, #tpu.memory_space<vmem>>, vector<16x1xf32>
    %12 = vector.broadcast %11 : vector<16x1xf32> to vector<16x256xf32>
    %13 = arith.addf %10, %12 : vector<16x256xf32>
    %14 = math.tanh %13 : vector<16x256xf32>
    %15 = tpu.iota {dimensions = array<i32: 1>} : vector<1x256xi32>
    %c4_i32 = arith.constant 4 : i32
    %16 = vector.broadcast %c4_i32 : i32 to vector<1x256xi32>
    %17 = arith.shrsi %15, %16 : vector<1x256xi32>
    %c15_i32 = arith.constant 15 : i32
    %18 = vector.broadcast %c15_i32 : i32 to vector<1x256xi32>
    %19 = arith.andi %15, %18 : vector<1x256xi32>
    %c17_i32 = arith.constant 17 : i32
    %20 = tpu.dynamic_rotate %14 by %c17_i32 dim 1 : vector<16x256xf32>, i32 -> vector<16x256xf32>
    %c1_i32 = arith.constant 1 : i32
    %21 = vector.broadcast %c1_i32 : i32 to vector<1x256xi32>
    %22 = arith.cmpi sge, %17, %21 : vector<1x256xi32>
    %c17_i32_6 = arith.constant 17 : i32
    %23 = vector.broadcast %c17_i32_6 : i32 to vector<1x256xi32>
    %24 = arith.cmpi slt, %17, %23 : vector<1x256xi32>
    %25 = arith.andi %22, %24 : vector<1x256xi1>
    %c1_i32_7 = arith.constant 1 : i32
    %26 = vector.broadcast %c1_i32_7 : i32 to vector<1x256xi32>
    %27 = arith.cmpi sge, %19, %26 : vector<1x256xi32>
    %28 = arith.andi %25, %27 : vector<1x256xi1>
    %c17_i32_8 = arith.constant 17 : i32
    %29 = vector.broadcast %c17_i32_8 : i32 to vector<1x256xi32>
    %30 = arith.cmpi slt, %19, %29 : vector<1x256xi32>
    %31 = arith.andi %28, %30 : vector<1x256xi1>
    %cst_9 = arith.constant 0.000000e+00 : f32
    %32 = vector.shape_cast %31 : vector<1x256xi1> to vector<1x256xi1>
    %33 = vector.broadcast %32 : vector<1x256xi1> to vector<16x256xi1>
    %34 = vector.broadcast %cst_9 : f32 to vector<16x256xf32>
    %35 = arith.select %33, %20, %34 : vector<16x256xi1>, vector<16x256xf32>
    %c16_i32 = arith.constant 16 : i32
    %36 = tpu.dynamic_rotate %14 by %c16_i32 dim 1 : vector<16x256xf32>, i32 -> vector<16x256xf32>
    %c1_i32_10 = arith.constant 1 : i32
    %37 = vector.broadcast %c1_i32_10 : i32 to vector<1x256xi32>
    %38 = arith.cmpi sge, %17, %37 : vector<1x256xi32>
    %c17_i32_11 = arith.constant 17 : i32
    %39 = vector.broadcast %c17_i32_11 : i32 to vector<1x256xi32>
    %40 = arith.cmpi slt, %17, %39 : vector<1x256xi32>
    %41 = arith.andi %38, %40 : vector<1x256xi1>
    %c0_i32 = arith.constant 0 : i32
    %42 = vector.broadcast %c0_i32 : i32 to vector<1x256xi32>
    %43 = arith.cmpi sge, %19, %42 : vector<1x256xi32>
    %44 = arith.andi %41, %43 : vector<1x256xi1>
    %c16_i32_12 = arith.constant 16 : i32
    %45 = vector.broadcast %c16_i32_12 : i32 to vector<1x256xi32>
    %46 = arith.cmpi slt, %19, %45 : vector<1x256xi32>
    %47 = arith.andi %44, %46 : vector<1x256xi1>
    %cst_13 = arith.constant 0.000000e+00 : f32
    %48 = vector.shape_cast %47 : vector<1x256xi1> to vector<1x256xi1>
    %49 = vector.broadcast %48 : vector<1x256xi1> to vector<16x256xi1>
    %50 = vector.broadcast %cst_13 : f32 to vector<16x256xf32>
    %51 = arith.select %49, %36, %50 : vector<16x256xi1>, vector<16x256xf32>
    %c15_i32_14 = arith.constant 15 : i32
    %52 = tpu.dynamic_rotate %14 by %c15_i32_14 dim 1 : vector<16x256xf32>, i32 -> vector<16x256xf32>
    %c1_i32_15 = arith.constant 1 : i32
    %53 = vector.broadcast %c1_i32_15 : i32 to vector<1x256xi32>
    %54 = arith.cmpi sge, %17, %53 : vector<1x256xi32>
    %c17_i32_16 = arith.constant 17 : i32
    %55 = vector.broadcast %c17_i32_16 : i32 to vector<1x256xi32>
    %56 = arith.cmpi slt, %17, %55 : vector<1x256xi32>
    %57 = arith.andi %54, %56 : vector<1x256xi1>
    %c-1_i32 = arith.constant -1 : i32
    %58 = vector.broadcast %c-1_i32 : i32 to vector<1x256xi32>
    %59 = arith.cmpi sge, %19, %58 : vector<1x256xi32>
    %60 = arith.andi %57, %59 : vector<1x256xi1>
    %c15_i32_17 = arith.constant 15 : i32
    %61 = vector.broadcast %c15_i32_17 : i32 to vector<1x256xi32>
    %62 = arith.cmpi slt, %19, %61 : vector<1x256xi32>
    %63 = arith.andi %60, %62 : vector<1x256xi1>
    %cst_18 = arith.constant 0.000000e+00 : f32
    %64 = vector.shape_cast %63 : vector<1x256xi1> to vector<1x256xi1>
    %65 = vector.broadcast %64 : vector<1x256xi1> to vector<16x256xi1>
    %66 = vector.broadcast %cst_18 : f32 to vector<16x256xf32>
    %67 = arith.select %65, %52, %66 : vector<16x256xi1>, vector<16x256xf32>
    %c1_i32_19 = arith.constant 1 : i32
    %68 = tpu.dynamic_rotate %14 by %c1_i32_19 dim 1 : vector<16x256xf32>, i32 -> vector<16x256xf32>
    %c0_i32_20 = arith.constant 0 : i32
    %69 = vector.broadcast %c0_i32_20 : i32 to vector<1x256xi32>
    %70 = arith.cmpi sge, %17, %69 : vector<1x256xi32>
    %c16_i32_21 = arith.constant 16 : i32
    %71 = vector.broadcast %c16_i32_21 : i32 to vector<1x256xi32>
    %72 = arith.cmpi slt, %17, %71 : vector<1x256xi32>
    %73 = arith.andi %70, %72 : vector<1x256xi1>
    %c1_i32_22 = arith.constant 1 : i32
    %74 = vector.broadcast %c1_i32_22 : i32 to vector<1x256xi32>
    %75 = arith.cmpi sge, %19, %74 : vector<1x256xi32>
    %76 = arith.andi %73, %75 : vector<1x256xi1>
    %c17_i32_23 = arith.constant 17 : i32
    %77 = vector.broadcast %c17_i32_23 : i32 to vector<1x256xi32>
    %78 = arith.cmpi slt, %19, %77 : vector<1x256xi32>
    %79 = arith.andi %76, %78 : vector<1x256xi1>
    %cst_24 = arith.constant 0.000000e+00 : f32
    %80 = vector.shape_cast %79 : vector<1x256xi1> to vector<1x256xi1>
    %81 = vector.broadcast %80 : vector<1x256xi1> to vector<16x256xi1>
    %82 = vector.broadcast %cst_24 : f32 to vector<16x256xf32>
    %83 = arith.select %81, %68, %82 : vector<16x256xi1>, vector<16x256xf32>
    %c0_i32_25 = arith.constant 0 : i32
    %84 = tpu.dynamic_rotate %14 by %c0_i32_25 dim 1 : vector<16x256xf32>, i32 -> vector<16x256xf32>
    %c0_i32_26 = arith.constant 0 : i32
    %85 = vector.broadcast %c0_i32_26 : i32 to vector<1x256xi32>
    %86 = arith.cmpi sge, %17, %85 : vector<1x256xi32>
    %c16_i32_27 = arith.constant 16 : i32
    %87 = vector.broadcast %c16_i32_27 : i32 to vector<1x256xi32>
    %88 = arith.cmpi slt, %17, %87 : vector<1x256xi32>
    %89 = arith.andi %86, %88 : vector<1x256xi1>
    %c0_i32_28 = arith.constant 0 : i32
    %90 = vector.broadcast %c0_i32_28 : i32 to vector<1x256xi32>
    %91 = arith.cmpi sge, %19, %90 : vector<1x256xi32>
    %92 = arith.andi %89, %91 : vector<1x256xi1>
    %c16_i32_29 = arith.constant 16 : i32
    %93 = vector.broadcast %c16_i32_29 : i32 to vector<1x256xi32>
    %94 = arith.cmpi slt, %19, %93 : vector<1x256xi32>
    %95 = arith.andi %92, %94 : vector<1x256xi1>
    %cst_30 = arith.constant 0.000000e+00 : f32
    %96 = vector.shape_cast %95 : vector<1x256xi1> to vector<1x256xi1>
    %97 = vector.broadcast %96 : vector<1x256xi1> to vector<16x256xi1>
    %98 = vector.broadcast %cst_30 : f32 to vector<16x256xf32>
    %99 = arith.select %97, %84, %98 : vector<16x256xi1>, vector<16x256xf32>
    %c255_i32 = arith.constant 255 : i32
    %100 = tpu.dynamic_rotate %14 by %c255_i32 dim 1 : vector<16x256xf32>, i32 -> vector<16x256xf32>
    %c0_i32_31 = arith.constant 0 : i32
    %101 = vector.broadcast %c0_i32_31 : i32 to vector<1x256xi32>
    %102 = arith.cmpi sge, %17, %101 : vector<1x256xi32>
    %c16_i32_32 = arith.constant 16 : i32
    %103 = vector.broadcast %c16_i32_32 : i32 to vector<1x256xi32>
    %104 = arith.cmpi slt, %17, %103 : vector<1x256xi32>
    %105 = arith.andi %102, %104 : vector<1x256xi1>
    %c-1_i32_33 = arith.constant -1 : i32
    %106 = vector.broadcast %c-1_i32_33 : i32 to vector<1x256xi32>
    %107 = arith.cmpi sge, %19, %106 : vector<1x256xi32>
    %108 = arith.andi %105, %107 : vector<1x256xi1>
    %c15_i32_34 = arith.constant 15 : i32
    %109 = vector.broadcast %c15_i32_34 : i32 to vector<1x256xi32>
    %110 = arith.cmpi slt, %19, %109 : vector<1x256xi32>
    %111 = arith.andi %108, %110 : vector<1x256xi1>
    %cst_35 = arith.constant 0.000000e+00 : f32
    %112 = vector.shape_cast %111 : vector<1x256xi1> to vector<1x256xi1>
    %113 = vector.broadcast %112 : vector<1x256xi1> to vector<16x256xi1>
    %114 = vector.broadcast %cst_35 : f32 to vector<16x256xf32>
    %115 = arith.select %113, %100, %114 : vector<16x256xi1>, vector<16x256xf32>
    %c241_i32 = arith.constant 241 : i32
    %116 = tpu.dynamic_rotate %14 by %c241_i32 dim 1 : vector<16x256xf32>, i32 -> vector<16x256xf32>
    %c-1_i32_36 = arith.constant -1 : i32
    %117 = vector.broadcast %c-1_i32_36 : i32 to vector<1x256xi32>
    %118 = arith.cmpi sge, %17, %117 : vector<1x256xi32>
    %c15_i32_37 = arith.constant 15 : i32
    %119 = vector.broadcast %c15_i32_37 : i32 to vector<1x256xi32>
    %120 = arith.cmpi slt, %17, %119 : vector<1x256xi32>
    %121 = arith.andi %118, %120 : vector<1x256xi1>
    %c1_i32_38 = arith.constant 1 : i32
    %122 = vector.broadcast %c1_i32_38 : i32 to vector<1x256xi32>
    %123 = arith.cmpi sge, %19, %122 : vector<1x256xi32>
    %124 = arith.andi %121, %123 : vector<1x256xi1>
    %c17_i32_39 = arith.constant 17 : i32
    %125 = vector.broadcast %c17_i32_39 : i32 to vector<1x256xi32>
    %126 = arith.cmpi slt, %19, %125 : vector<1x256xi32>
    %127 = arith.andi %124, %126 : vector<1x256xi1>
    %cst_40 = arith.constant 0.000000e+00 : f32
    %128 = vector.shape_cast %127 : vector<1x256xi1> to vector<1x256xi1>
    %129 = vector.broadcast %128 : vector<1x256xi1> to vector<16x256xi1>
    %130 = vector.broadcast %cst_40 : f32 to vector<16x256xf32>
    %131 = arith.select %129, %116, %130 : vector<16x256xi1>, vector<16x256xf32>
    %c240_i32 = arith.constant 240 : i32
    %132 = tpu.dynamic_rotate %14 by %c240_i32 dim 1 : vector<16x256xf32>, i32 -> vector<16x256xf32>
    %c-1_i32_41 = arith.constant -1 : i32
    %133 = vector.broadcast %c-1_i32_41 : i32 to vector<1x256xi32>
    %134 = arith.cmpi sge, %17, %133 : vector<1x256xi32>
    %c15_i32_42 = arith.constant 15 : i32
    %135 = vector.broadcast %c15_i32_42 : i32 to vector<1x256xi32>
    %136 = arith.cmpi slt, %17, %135 : vector<1x256xi32>
    %137 = arith.andi %134, %136 : vector<1x256xi1>
    %c0_i32_43 = arith.constant 0 : i32
    %138 = vector.broadcast %c0_i32_43 : i32 to vector<1x256xi32>
    %139 = arith.cmpi sge, %19, %138 : vector<1x256xi32>
    %140 = arith.andi %137, %139 : vector<1x256xi1>
    %c16_i32_44 = arith.constant 16 : i32
    %141 = vector.broadcast %c16_i32_44 : i32 to vector<1x256xi32>
    %142 = arith.cmpi slt, %19, %141 : vector<1x256xi32>
    %143 = arith.andi %140, %142 : vector<1x256xi1>
    %cst_45 = arith.constant 0.000000e+00 : f32
    %144 = vector.shape_cast %143 : vector<1x256xi1> to vector<1x256xi1>
    %145 = vector.broadcast %144 : vector<1x256xi1> to vector<16x256xi1>
    %146 = vector.broadcast %cst_45 : f32 to vector<16x256xf32>
    %147 = arith.select %145, %132, %146 : vector<16x256xi1>, vector<16x256xf32>
    %c239_i32 = arith.constant 239 : i32
    %148 = tpu.dynamic_rotate %14 by %c239_i32 dim 1 : vector<16x256xf32>, i32 -> vector<16x256xf32>
    %c-1_i32_46 = arith.constant -1 : i32
    %149 = vector.broadcast %c-1_i32_46 : i32 to vector<1x256xi32>
    %150 = arith.cmpi sge, %17, %149 : vector<1x256xi32>
    %c15_i32_47 = arith.constant 15 : i32
    %151 = vector.broadcast %c15_i32_47 : i32 to vector<1x256xi32>
    %152 = arith.cmpi slt, %17, %151 : vector<1x256xi32>
    %153 = arith.andi %150, %152 : vector<1x256xi1>
    %c-1_i32_48 = arith.constant -1 : i32
    %154 = vector.broadcast %c-1_i32_48 : i32 to vector<1x256xi32>
    %155 = arith.cmpi sge, %19, %154 : vector<1x256xi32>
    %156 = arith.andi %153, %155 : vector<1x256xi1>
    %c15_i32_49 = arith.constant 15 : i32
    %157 = vector.broadcast %c15_i32_49 : i32 to vector<1x256xi32>
    %158 = arith.cmpi slt, %19, %157 : vector<1x256xi32>
    %159 = arith.andi %156, %158 : vector<1x256xi1>
    %cst_50 = arith.constant 0.000000e+00 : f32
    %160 = vector.shape_cast %159 : vector<1x256xi1> to vector<1x256xi1>
    %161 = vector.broadcast %160 : vector<1x256xi1> to vector<16x256xi1>
    %162 = vector.broadcast %cst_50 : f32 to vector<16x256xf32>
    %163 = arith.select %161, %148, %162 : vector<16x256xi1>, vector<16x256xf32>
    %164 = tpu.concatenate %35, %51, %67, %83, %99, %115, %131, %147, %163 in 0 : vector<16x256xf32>, vector<16x256xf32>, vector<16x256xf32>, vector<16x256xf32>, vector<16x256xf32>, vector<16x256xf32>, vector<16x256xf32>, vector<16x256xf32>, vector<16x256xf32> -> vector<144x256xf32>
    %c0_51 = arith.constant 0 : index
    %c0_52 = arith.constant 0 : index
    %165 = vector.load %arg4[%c0_51, %c0_52] : memref<8x144xf32, #tpu.memory_space<vmem>>, vector<8x144xf32>
    %cst_53 = arith.constant dense<0.000000e+00> : vector<8x256xf32>
    %166 = tpu.matmul %165, %164, %cst_53 {dimension_numbers = #tpu.dot_dimension_numbers<[1], [0], [0], [1], [0, 0, 1, 1], [], []>} : vector<8x144xf32>, vector<144x256xf32>, vector<8x256xf32> -> vector<8x256xf32>
    %c255_i32_54 = arith.constant 255 : i32
    %167 = tpu.dynamic_rotate %166 by %c255_i32_54 dim 1 : vector<8x256xf32>, i32 -> vector<8x256xf32>
    %168 = arith.maximumf %166, %167 : vector<8x256xf32>
    %c240_i32_55 = arith.constant 240 : i32
    %169 = tpu.dynamic_rotate %166 by %c240_i32_55 dim 1 : vector<8x256xf32>, i32 -> vector<8x256xf32>
    %c239_i32_56 = arith.constant 239 : i32
    %170 = tpu.dynamic_rotate %166 by %c239_i32_56 dim 1 : vector<8x256xf32>, i32 -> vector<8x256xf32>
    %171 = arith.maximumf %169, %170 : vector<8x256xf32>
    %172 = arith.maximumf %168, %171 : vector<8x256xf32>
    %c0_57 = arith.constant 0 : index
    %c0_58 = arith.constant 0 : index
    %173 = vector.load %arg6[%c0_57, %c0_58] : memref<256x64xf32, #tpu.memory_space<vmem>>, vector<256x64xf32>
    %cst_59 = arith.constant dense<0.000000e+00> : vector<8x64xf32>
    %174 = tpu.matmul %172, %173, %cst_59 {dimension_numbers = #tpu.dot_dimension_numbers<[1], [0], [0], [1], [0, 0, 1, 1], [], []>} : vector<8x256xf32>, vector<256x64xf32>, vector<8x64xf32> -> vector<8x64xf32>
    %c0_60 = arith.constant 0 : index
    %c0_61 = arith.constant 0 : index
    %175 = vector.load %arg5[%c0_60, %c0_61] : memref<8x1xf32, #tpu.memory_space<vmem>>, vector<8x1xf32>
    %176 = vector.broadcast %175 : vector<8x1xf32> to vector<8x64xf32>
    %177 = arith.addf %174, %176 : vector<8x64xf32>
    %178 = math.tanh %177 : vector<8x64xf32>
    %179 = vector.extract_strided_slice %178 {offsets = [0, 0], sizes = [1, 64], strides = [1, 1]} : vector<8x64xf32> to vector<1x64xf32>
    %c0_62 = arith.constant 0 : index
    %c0_63 = arith.constant 0 : index
    %c0_64 = arith.constant 0 : index
    %180 = vector.load %arg7[%c0_62, %c0_63, %c0_64] : memref<8x64x32xf32, #tpu.memory_space<vmem>>, vector<1x64x32xf32>
    %181 = vector.shape_cast %180 : vector<1x64x32xf32> to vector<64x32xf32>
    %cst_65 = arith.constant dense<0.000000e+00> : vector<1x32xf32>
    %182 = tpu.matmul %179, %181, %cst_65 {dimension_numbers = #tpu.dot_dimension_numbers<[1], [0], [0], [1], [0, 0, 1, 1], [], []>} : vector<1x64xf32>, vector<64x32xf32>, vector<1x32xf32> -> vector<1x32xf32>
    %183 = vector.extract_strided_slice %178 {offsets = [1, 0], sizes = [1, 64], strides = [1, 1]} : vector<8x64xf32> to vector<1x64xf32>
    %c1 = arith.constant 1 : index
    %c0_66 = arith.constant 0 : index
    %c0_67 = arith.constant 0 : index
    %184 = vector.load %arg7[%c1, %c0_66, %c0_67] : memref<8x64x32xf32, #tpu.memory_space<vmem>>, vector<1x64x32xf32>
    %185 = vector.shape_cast %184 : vector<1x64x32xf32> to vector<64x32xf32>
    %cst_68 = arith.constant dense<0.000000e+00> : vector<1x32xf32>
    %186 = tpu.matmul %183, %185, %cst_68 {dimension_numbers = #tpu.dot_dimension_numbers<[1], [0], [0], [1], [0, 0, 1, 1], [], []>} : vector<1x64xf32>, vector<64x32xf32>, vector<1x32xf32> -> vector<1x32xf32>
    %187 = arith.addf %182, %186 : vector<1x32xf32>
    %188 = vector.extract_strided_slice %178 {offsets = [2, 0], sizes = [1, 64], strides = [1, 1]} : vector<8x64xf32> to vector<1x64xf32>
    %c2 = arith.constant 2 : index
    %c0_69 = arith.constant 0 : index
    %c0_70 = arith.constant 0 : index
    %189 = vector.load %arg7[%c2, %c0_69, %c0_70] : memref<8x64x32xf32, #tpu.memory_space<vmem>>, vector<1x64x32xf32>
    %190 = vector.shape_cast %189 : vector<1x64x32xf32> to vector<64x32xf32>
    %cst_71 = arith.constant dense<0.000000e+00> : vector<1x32xf32>
    %191 = tpu.matmul %188, %190, %cst_71 {dimension_numbers = #tpu.dot_dimension_numbers<[1], [0], [0], [1], [0, 0, 1, 1], [], []>} : vector<1x64xf32>, vector<64x32xf32>, vector<1x32xf32> -> vector<1x32xf32>
    %192 = arith.addf %187, %191 : vector<1x32xf32>
    %193 = vector.extract_strided_slice %178 {offsets = [3, 0], sizes = [1, 64], strides = [1, 1]} : vector<8x64xf32> to vector<1x64xf32>
    %c3 = arith.constant 3 : index
    %c0_72 = arith.constant 0 : index
    %c0_73 = arith.constant 0 : index
    %194 = vector.load %arg7[%c3, %c0_72, %c0_73] : memref<8x64x32xf32, #tpu.memory_space<vmem>>, vector<1x64x32xf32>
    %195 = vector.shape_cast %194 : vector<1x64x32xf32> to vector<64x32xf32>
    %cst_74 = arith.constant dense<0.000000e+00> : vector<1x32xf32>
    %196 = tpu.matmul %193, %195, %cst_74 {dimension_numbers = #tpu.dot_dimension_numbers<[1], [0], [0], [1], [0, 0, 1, 1], [], []>} : vector<1x64xf32>, vector<64x32xf32>, vector<1x32xf32> -> vector<1x32xf32>
    %197 = arith.addf %192, %196 : vector<1x32xf32>
    %198 = vector.extract_strided_slice %178 {offsets = [4, 0], sizes = [1, 64], strides = [1, 1]} : vector<8x64xf32> to vector<1x64xf32>
    %c4 = arith.constant 4 : index
    %c0_75 = arith.constant 0 : index
    %c0_76 = arith.constant 0 : index
    %199 = vector.load %arg7[%c4, %c0_75, %c0_76] : memref<8x64x32xf32, #tpu.memory_space<vmem>>, vector<1x64x32xf32>
    %200 = vector.shape_cast %199 : vector<1x64x32xf32> to vector<64x32xf32>
    %cst_77 = arith.constant dense<0.000000e+00> : vector<1x32xf32>
    %201 = tpu.matmul %198, %200, %cst_77 {dimension_numbers = #tpu.dot_dimension_numbers<[1], [0], [0], [1], [0, 0, 1, 1], [], []>} : vector<1x64xf32>, vector<64x32xf32>, vector<1x32xf32> -> vector<1x32xf32>
    %202 = arith.addf %197, %201 : vector<1x32xf32>
    %203 = vector.extract_strided_slice %178 {offsets = [5, 0], sizes = [1, 64], strides = [1, 1]} : vector<8x64xf32> to vector<1x64xf32>
    %c5 = arith.constant 5 : index
    %c0_78 = arith.constant 0 : index
    %c0_79 = arith.constant 0 : index
    %204 = vector.load %arg7[%c5, %c0_78, %c0_79] : memref<8x64x32xf32, #tpu.memory_space<vmem>>, vector<1x64x32xf32>
    %205 = vector.shape_cast %204 : vector<1x64x32xf32> to vector<64x32xf32>
    %cst_80 = arith.constant dense<0.000000e+00> : vector<1x32xf32>
    %206 = tpu.matmul %203, %205, %cst_80 {dimension_numbers = #tpu.dot_dimension_numbers<[1], [0], [0], [1], [0, 0, 1, 1], [], []>} : vector<1x64xf32>, vector<64x32xf32>, vector<1x32xf32> -> vector<1x32xf32>
    %207 = arith.addf %202, %206 : vector<1x32xf32>
    %208 = vector.extract_strided_slice %178 {offsets = [6, 0], sizes = [1, 64], strides = [1, 1]} : vector<8x64xf32> to vector<1x64xf32>
    %c6 = arith.constant 6 : index
    %c0_81 = arith.constant 0 : index
    %c0_82 = arith.constant 0 : index
    %209 = vector.load %arg7[%c6, %c0_81, %c0_82] : memref<8x64x32xf32, #tpu.memory_space<vmem>>, vector<1x64x32xf32>
    %210 = vector.shape_cast %209 : vector<1x64x32xf32> to vector<64x32xf32>
    %cst_83 = arith.constant dense<0.000000e+00> : vector<1x32xf32>
    %211 = tpu.matmul %208, %210, %cst_83 {dimension_numbers = #tpu.dot_dimension_numbers<[1], [0], [0], [1], [0, 0, 1, 1], [], []>} : vector<1x64xf32>, vector<64x32xf32>, vector<1x32xf32> -> vector<1x32xf32>
    %212 = arith.addf %207, %211 : vector<1x32xf32>
    %213 = vector.extract_strided_slice %178 {offsets = [7, 0], sizes = [1, 64], strides = [1, 1]} : vector<8x64xf32> to vector<1x64xf32>
    %c7 = arith.constant 7 : index
    %c0_84 = arith.constant 0 : index
    %c0_85 = arith.constant 0 : index
    %214 = vector.load %arg7[%c7, %c0_84, %c0_85] : memref<8x64x32xf32, #tpu.memory_space<vmem>>, vector<1x64x32xf32>
    %215 = vector.shape_cast %214 : vector<1x64x32xf32> to vector<64x32xf32>
    %cst_86 = arith.constant dense<0.000000e+00> : vector<1x32xf32>
    %216 = tpu.matmul %213, %215, %cst_86 {dimension_numbers = #tpu.dot_dimension_numbers<[1], [0], [0], [1], [0, 0, 1, 1], [], []>} : vector<1x64xf32>, vector<64x32xf32>, vector<1x32xf32> -> vector<1x32xf32>
    %217 = arith.addf %212, %216 : vector<1x32xf32>
    %c0_87 = arith.constant 0 : index
    %c0_88 = arith.constant 0 : index
    %218 = vector.load %arg8[%c0_87, %c0_88] : memref<1x32xf32, #tpu.memory_space<vmem>>, vector<1x32xf32>
    %219 = arith.addf %217, %218 : vector<1x32xf32>
    %220 = math.tanh %219 : vector<1x32xf32>
    %c0_89 = arith.constant 0 : index
    %c0_90 = arith.constant 0 : index
    %221 = vector.load %arg9[%c0_89, %c0_90] : memref<32x2xf32, #tpu.memory_space<vmem>>, vector<32x2xf32>
    %cst_91 = arith.constant dense<0.000000e+00> : vector<1x2xf32>
    %222 = tpu.matmul %220, %221, %cst_91 {dimension_numbers = #tpu.dot_dimension_numbers<[1], [0], [0], [1], [0, 0, 1, 1], [], []>} : vector<1x32xf32>, vector<32x2xf32>, vector<1x2xf32> -> vector<1x2xf32>
    %c0_92 = arith.constant 0 : index
    %c0_93 = arith.constant 0 : index
    %223 = vector.load %arg10[%c0_92, %c0_93] : memref<1x2xf32, #tpu.memory_space<vmem>>, vector<1x2xf32>
    %224 = arith.addf %222, %223 : vector<1x2xf32>
    %cst_94 = arith.constant dense<0xFF800000> : vector<1xf32>
    %225 = vector.multi_reduction <maximumf>, %224, %cst_94 [1] : vector<1x2xf32> to vector<1xf32>
    %226 = vector.shape_cast %225 : vector<1xf32> to vector<1x1xf32>
    %227 = vector.broadcast %226 : vector<1x1xf32> to vector<1x2xf32>
    %228 = arith.subf %224, %227 : vector<1x2xf32>
    %229 = math.exp %228 : vector<1x2xf32>
    %cst_95 = arith.constant dense<0.000000e+00> : vector<1xf32>
    %230 = vector.multi_reduction <add>, %229, %cst_95 [1] : vector<1x2xf32> to vector<1xf32>
    %231 = vector.shape_cast %230 : vector<1xf32> to vector<1x1xf32>
    %232 = math.log %231 : vector<1x1xf32>
    %233 = vector.broadcast %232 : vector<1x1xf32> to vector<1x2xf32>
    %234 = arith.subf %228, %233 : vector<1x2xf32>
    %c0_96 = arith.constant 0 : index
    %c0_97 = arith.constant 0 : index
    %c0_98 = arith.constant 0 : index
    %235 = vector.load %arg11[%c0_96, %c0_97, %c0_98] : memref<1x1x2xf32, #tpu.memory_space<vmem>>, vector<1x1x2xf32>
    %236 = vector.shape_cast %235 : vector<1x1x2xf32> to vector<1x2xf32>
    %237 = vector.shape_cast %234 : vector<1x2xf32> to vector<1x1x2xf32>
    tpu.vector_store %arg11[%c0_96, %c0_97, %c0_98], %237 {strides = array<i32>} : memref<1x1x2xf32, #tpu.memory_space<vmem>>, vector<1x1x2xf32>,
    return
  }
  func.func @transform_0(%arg0: i32) -> (i32, i32, i32) {
    %c0_i32 = arith.constant 0 : i32
    %c0_i32_0 = arith.constant 0 : i32
    %c0_i32_1 = arith.constant 0 : i32
    return %arg0, %c0_i32, %c0_i32_0 : i32, i32, i32
  }
  func.func @transform_1(%arg0: i32) -> (i32, i32) {
    %c0_i32 = arith.constant 0 : i32
    %c0_i32_0 = arith.constant 0 : i32
    %c0_i32_1 = arith.constant 0 : i32
    return %c0_i32, %c0_i32_0 : i32, i32
  }
  func.func @transform_2(%arg0: i32) -> (i32, i32) {
    %c0_i32 = arith.constant 0 : i32
    %c0_i32_0 = arith.constant 0 : i32
    %c0_i32_1 = arith.constant 0 : i32
    return %c0_i32, %c0_i32_0 : i32, i32
  }
  func.func @transform_3(%arg0: i32) -> (i32, i32) {
    %c0_i32 = arith.constant 0 : i32
    %c0_i32_0 = arith.constant 0 : i32
    %c0_i32_1 = arith.constant 0 : i32
    return %c0_i32, %c0_i32_0 : i32, i32
  }
  func.func @transform_4(%arg0: i32) -> (i32, i32) {
    %c0_i32 = arith.constant 0 : i32
    %c0_i32_0 = arith.constant 0 : i32
    %c0_i32_1 = arith.constant 0 : i32
    return %c0_i32, %c0_i32_0 : i32, i32
  }
  func.func @transform_5(%arg0: i32) -> (i32, i32) {
    %c0_i32 = arith.constant 0 : i32
    %c0_i32_0 = arith.constant 0 : i32
    %c0_i32_1 = arith.constant 0 : i32
    return %c0_i32, %c0_i32_0 : i32, i32
  }
  func.func @transform_6(%arg0: i32) -> (i32, i32, i32) {
    %c0_i32 = arith.constant 0 : i32
    %c0_i32_0 = arith.constant 0 : i32
    %c0_i32_1 = arith.constant 0 : i32
    %c0_i32_2 = arith.constant 0 : i32
    return %c0_i32, %c0_i32_0, %c0_i32_1 : i32, i32, i32
  }
  func.func @transform_7(%arg0: i32) -> (i32, i32) {
    %c0_i32 = arith.constant 0 : i32
    %c0_i32_0 = arith.constant 0 : i32
    %c0_i32_1 = arith.constant 0 : i32
    return %c0_i32, %c0_i32_0 : i32, i32
  }
  func.func @transform_8(%arg0: i32) -> (i32, i32) {
    %c0_i32 = arith.constant 0 : i32
    %c0_i32_0 = arith.constant 0 : i32
    %c0_i32_1 = arith.constant 0 : i32
    return %c0_i32, %c0_i32_0 : i32, i32
  }
  func.func @transform_9(%arg0: i32) -> (i32, i32) {
    %c0_i32 = arith.constant 0 : i32
    %c0_i32_0 = arith.constant 0 : i32
    %c0_i32_1 = arith.constant 0 : i32
    return %c0_i32, %c0_i32_0 : i32, i32
  }
  func.func @transform_10(%arg0: i32) -> (i32, i32, i32) {
    %c0_i32 = arith.constant 0 : i32
    %c0_i32_0 = arith.constant 0 : i32
    %c0_i32_1 = arith.constant 0 : i32
    return %arg0, %c0_i32, %c0_i32_0 : i32, i32, i32
  }
}

</mosaic_0001>

<llo_original>
// kernel: convnet_forward.1
$region0: #{convnet_forward.1}
  #allocation0 [shape = 'u32[]', space=smem, size = 0x4, offset = 0x4, fixed_abs, tag = 'smem constant byte address 0x4 - core index']
  #allocation1 [shape = 'u32[144,128]{1,0:T(1,128)}', space=vmem, size = 0x12000, scoped, tag = 'internal scratch']
  %s0 = inlined_call_operand.vmem [shape: f32[2,27,1024], index: 0, kind: input, shape index: {}]
  %s1 = inlined_call_operand.vmem [shape: f32[16,27], index: 1, kind: input, shape index: {}]
  %s2 = inlined_call_operand.vmem [shape: f32[16,1], index: 2, kind: input, shape index: {}]
  %s3 = inlined_call_operand.vmem [shape: f32[8,144], index: 3, kind: input, shape index: {}]
  %s4 = inlined_call_operand.vmem [shape: f32[8,1], index: 4, kind: input, shape index: {}]
  %s5 = inlined_call_operand.vmem [shape: f32[256,64], index: 5, kind: input, shape index: {}]
  %s6 = inlined_call_operand.vmem [shape: f32[8,64,32], index: 6, kind: input, shape index: {}]
  %s7 = inlined_call_operand.vmem [shape: f32[1,32], index: 7, kind: input, shape index: {}]
  %s8 = inlined_call_operand.vmem [shape: f32[32,2], index: 8, kind: input, shape index: {}]
  %s9 = inlined_call_operand.vmem [shape: f32[1,2], index: 9, kind: input, shape index: {}]
  %s10 = inlined_call_operand.hbm [shape: f32[2,1,2], index: 10, kind: output, shape index: {}]
  %s11 = sld [smem:[#allocation0]]
  $region73: #{convnet_forward.1} parent=0
    _
  %s13 = ssub.s32 1, %s11
  %s14 = scalar_select 0, %s13, %s11
  $region1: #{convnet_forward.1} parent=0
    #allocation2 [shape = 'u8[1024]{0}', space=vmem, size = 0x400, scoped, tag = 'output window, operand 0']
    #allocation3 [shape = 's32[2]{0}', space=sflag, size = 0x8, scoped, tag = 'scoped memory for convnet_forward.1']
    %15 = vsyncpa [#allocation3], 0
    %s16 = scalar_lea.sflag [#allocation3], 1
    %17 = vsyncpa %s16, 0
    loop: start=0, step=1, limit=4
    $region2: #{convnet_forward.1} parent=1 // loop_pre_header
      _
    $region3: #{convnet_forward.1} parent=1 // loop_header
      %s19 = sphi 0, %s23
      %p20 = scmp.ge.s32.totalorder %s19, 4
      %s29 = sphi 0, %s31
      %s32 = sphi 0, %s29
      %s33 = sphi 0, %s32
      %s49 = sphi 0, %s33
      %s53 = sphi 0, %s53
      %s55 = sphi 0, %s53
      %s56 = sphi 0, %s55
      %s70 = sphi 0, %s56
      %s74 = sphi 0, %s74
      %s76 = sphi 0, %s74
      %s77 = sphi 0, %s76
      %s91 = sphi 0, %s77
      %s95 = sphi 0, %s95
      %s97 = sphi 0, %s95
      %s98 = sphi 0, %s97
      %s112 = sphi 0, %s98
      %s116 = sphi 0, %s116
      %s118 = sphi 0, %s116
      %s119 = sphi 0, %s118
      %s133 = sphi 0, %s119
      %s137 = sphi 0, %s137
      %s139 = sphi 0, %s137
      %s140 = sphi 0, %s139
      %s154 = sphi 0, %s140
      %s158 = sphi 0, %s158
      %s160 = sphi 0, %s158
      %s161 = sphi 0, %s160
      %s175 = sphi 0, %s161
      %s179 = sphi 0, %s179
      %s181 = sphi 0, %s179
      %s182 = sphi 0, %s181
      %s196 = sphi 0, %s182
      %s200 = sphi 0, %s200
      %s202 = sphi 0, %s200
      %s203 = sphi 0, %s202
      %s217 = sphi 0, %s203
      %s221 = sphi 0, %s221
      %s223 = sphi 0, %s221
      %s224 = sphi 0, %s223
      %s238 = sphi 0, %s224
      %s244 = sphi 0, %s246
      %s247 = sphi 0, %s244
      %s248 = sphi 0, %s247
      %s264 = sphi 0, %s248
    $region4: #{convnet_forward.1} parent=1 // loop_header_branch
      %22 = sbr.rel (%p20) target = $region8
    $region5: #{convnet_forward.1} parent=1 // loop_body
      %s24 = ssub.s32 %s19, 1
      %s25 = ssub.s32 %s19, 2
      %s26 = sadd.s32 %s19, 1
      %s27 = ssub.s32 %s19, %s26
      %p28 = scmp.eq.s32.totalorder %s27, 0
      %s30 = sadd.s32 %s29, 1
      %s31 = scalar_select %p28, %s29, %s30
      %p34 = pneg %p28
      %p35 = scmp.eq.s32.totalorder %s19, 1
      %p36 = por %p34, %p35
      %p37 = scmp.ne.s32.totalorder %s29, %s32
      %p38 = scmp.eq.s32.totalorder %s19, 0
      %p39 = por %p37, %p38
      %p40 = scmp.ne.s32.totalorder %s29, %s32
      %p41 = scmp.eq.s32.totalorder %s24, 1
      %p42 = por %p40, %p41
      %p43 = scmp.ne.s32.totalorder %s32, %s33
      %p44 = scmp.eq.s32.totalorder %s24, 0
      %p45 = por %p43, %p44
      %p46 = scmp.ne.s32.totalorder %s32, %s33
      %p47 = scmp.eq.s32.totalorder %s25, 1
      %p48 = por %p46, %p47
      %p50 = scmp.ne.s32.totalorder %s33, %s49
      %p51 = scmp.eq.s32.totalorder %s25, 0
      %p52 = por %p50, %p51
      %s54 = sadd.s32 %s53, 1
      %p57 = scmp.eq.s32.totalorder %s19, 1
      %p58 = scmp.ne.s32.totalorder %s53, %s55
      %p59 = scmp.eq.s32.totalorder %s19, 0
      %p60 = por %p58, %p59
      %p61 = scmp.ne.s32.totalorder %s53, %s55
      %p62 = scmp.eq.s32.totalorder %s24, 1
      %p63 = por %p61, %p62
      %p64 = scmp.ne.s32.totalorder %s55, %s56
      %p65 = scmp.eq.s32.totalorder %s24, 0
      %p66 = por %p64, %p65
      %p67 = scmp.ne.s32.totalorder %s55, %s56
      %p68 = scmp.eq.s32.totalorder %s25, 1
      %p69 = por %p67, %p68
      %p71 = scmp.ne.s32.totalorder %s56, %s70
      %p72 = scmp.eq.s32.totalorder %s25, 0
      %p73 = por %p71, %p72
      %s75 = sadd.s32 %s74, 1
      %p78 = scmp.eq.s32.totalorder %s19, 1
      %p79 = scmp.ne.s32.totalorder %s74, %s76
      %p80 = scmp.eq.s32.totalorder %s19, 0
      %p81 = por %p79, %p80
      %p82 = scmp.ne.s32.totalorder %s74, %s76
      %p83 = scmp.eq.s32.totalorder %s24, 1
      %p84 = por %p82, %p83
      %p85 = scmp.ne.s32.totalorder %s76, %s77
      %p86 = scmp.eq.s32.totalorder %s24, 0
      %p87 = por %p85, %p86
      %p88 = scmp.ne.s32.totalorder %s76, %s77
      %p89 = scmp.eq.s32.totalorder %s25, 1
      %p90 = por %p88, %p89
      %p92 = scmp.ne.s32.totalorder %s77, %s91
      %p93 = scmp.eq.s32.totalorder %s25, 0
      %p94 = por %p92, %p93
      %s96 = sadd.s32 %s95, 1
      %p99 = scmp.eq.s32.totalorder %s19, 1
      %p100 = scmp.ne.s32.totalorder %s95, %s97
      %p101 = scmp.eq.s32.totalorder %s19, 0
      %p102 = por %p100, %p101
      %p103 = scmp.ne.s32.totalorder %s95, %s97
      %p104 = scmp.eq.s32.totalorder %s24, 1
      %p105 = por %p103, %p104
      %p106 = scmp.ne.s32.totalorder %s97, %s98
      %p107 = scmp.eq.s32.totalorder %s24, 0
      %p108 = por %p106, %p107
      %p109 = scmp.ne.s32.totalorder %s97, %s98
      %p110 = scmp.eq.s32.totalorder %s25, 1
      %p111 = por %p109, %p110
      %p113 = scmp.ne.s32.totalorder %s98, %s112
      %p114 = scmp.eq.s32.totalorder %s25, 0
      %p115 = por %p113, %p114
      %s117 = sadd.s32 %s116, 1
      %p120 = scmp.eq.s32.totalorder %s19, 1
      %p121 = scmp.ne.s32.totalorder %s116, %s118
      %p122 = scmp.eq.s32.totalorder %s19, 0
      %p123 = por %p121, %p122
      %p124 = scmp.ne.s32.totalorder %s116, %s118
      %p125 = scmp.eq.s32.totalorder %s24, 1
      %p126 = por %p124, %p125
      %p127 = scmp.ne.s32.totalorder %s118, %s119
      %p128 = scmp.eq.s32.totalorder %s24, 0
      %p129 = por %p127, %p128
      %p130 = scmp.ne.s32.totalorder %s118, %s119
      %p131 = scmp.eq.s32.totalorder %s25, 1
      %p132 = por %p130, %p131
      %p134 = scmp.ne.s32.totalorder %s119, %s133
      %p135 = scmp.eq.s32.totalorder %s25, 0
      %p136 = por %p134, %p135
      %s138 = sadd.s32 %s137, 1
      %p141 = scmp.eq.s32.totalorder %s19, 1
      %p142 = scmp.ne.s32.totalorder %s137, %s139
      %p143 = scmp.eq.s32.totalorder %s19, 0
      %p144 = por %p142, %p143
      %p145 = scmp.ne.s32.totalorder %s137, %s139
      %p146 = scmp.eq.s32.totalorder %s24, 1
      %p147 = por %p145, %p146
      %p148 = scmp.ne.s32.totalorder %s139, %s140
      %p149 = scmp.eq.s32.totalorder %s24, 0
      %p150 = por %p148, %p149
      %p151 = scmp.ne.s32.totalorder %s139, %s140
      %p152 = scmp.eq.s32.totalorder %s25, 1
      %p153 = por %p151, %p152
      %p155 = scmp.ne.s32.totalorder %s140, %s154
      %p156 = scmp.eq.s32.totalorder %s25, 0
      %p157 = por %p155, %p156
      %s159 = sadd.s32 %s158, 1
      %p162 = scmp.eq.s32.totalorder %s19, 1
      %p163 = scmp.ne.s32.totalorder %s158, %s160
      %p164 = scmp.eq.s32.totalorder %s19, 0
      %p165 = por %p163, %p164
      %p166 = scmp.ne.s32.totalorder %s158, %s160
      %p167 = scmp.eq.s32.totalorder %s24, 1
      %p168 = por %p166, %p167
      %p169 = scmp.ne.s32.totalorder %s160, %s161
      %p170 = scmp.eq.s32.totalorder %s24, 0
      %p171 = por %p169, %p170
      %p172 = scmp.ne.s32.totalorder %s160, %s161
      %p173 = scmp.eq.s32.totalorder %s25, 1
      %p174 = por %p172, %p173
      %p176 = scmp.ne.s32.totalorder %s161, %s175
      %p177 = scmp.eq.s32.totalorder %s25, 0
      %p178 = por %p176, %p177
      %s180 = sadd.s32 %s179, 1
      %p183 = scmp.eq.s32.totalorder %s19, 1
      %p184 = scmp.ne.s32.totalorder %s179, %s181
      %p185 = scmp.eq.s32.totalorder %s19, 0
      %p186 = por %p184, %p185
      %p187 = scmp.ne.s32.totalorder %s179, %s181
      %p188 = scmp.eq.s32.totalorder %s24, 1
      %p189 = por %p187, %p188
      %p190 = scmp.ne.s32.totalorder %s181, %s182
      %p191 = scmp.eq.s32.totalorder %s24, 0
      %p192 = por %p190, %p191
      %p193 = scmp.ne.s32.totalorder %s181, %s182
      %p194 = scmp.eq.s32.totalorder %s25, 1
      %p195 = por %p193, %p194
      %p197 = scmp.ne.s32.totalorder %s182, %s196
      %p198 = scmp.eq.s32.totalorder %s25, 0
      %p199 = por %p197, %p198
      %s201 = sadd.s32 %s200, 1
      %p204 = scmp.eq.s32.totalorder %s19, 1
      %p205 = scmp.ne.s32.totalorder %s200, %s202
      %p206 = scmp.eq.s32.totalorder %s19, 0
      %p207 = por %p205, %p206
      %p208 = scmp.ne.s32.totalorder %s200, %s202
      %p209 = scmp.eq.s32.totalorder %s24, 1
      %p210 = por %p208, %p209
      %p211 = scmp.ne.s32.totalorder %s202, %s203
      %p212 = scmp.eq.s32.totalorder %s24, 0
      %p213 = por %p211, %p212
      %p214 = scmp.ne.s32.totalorder %s202, %s203
      %p215 = scmp.eq.s32.totalorder %s25, 1
      %p216 = por %p214, %p215
      %p218 = scmp.ne.s32.totalorder %s203, %s217
      %p219 = scmp.eq.s32.totalorder %s25, 0
      %p220 = por %p218, %p219
      %s222 = sadd.s32 %s221, 1
      %p225 = scmp.eq.s32.totalorder %s19, 1
      %p226 = scmp.ne.s32.totalorder %s221, %s223
      %p227 = scmp.eq.s32.totalorder %s19, 0
      %p228 = por %p226, %p227
      %p229 = scmp.ne.s32.totalorder %s221, %s223
      %p230 = scmp.eq.s32.totalorder %s24, 1
      %p231 = por %p229, %p230
      %p232 = scmp.ne.s32.totalorder %s223, %s224
      %p233 = scmp.eq.s32.totalorder %s24, 0
      %p234 = por %p232, %p233
      %p235 = scmp.ne.s32.totalorder %s223, %s224
      %p236 = scmp.eq.s32.totalorder %s25, 1
      %p237 = por %p235, %p236
      %p239 = scmp.ne.s32.totalorder %s224, %s238
      %p240 = scmp.eq.s32.totalorder %s25, 0
      %p241 = por %p239, %p240
      %s242 = ssub.s32 %s19, %s26
      %p243 = scmp.eq.s32.totalorder %s242, 0
      %s245 = sadd.s32 %s244, 1
      %s246 = scalar_select %p243, %s244, %s245
      %p249 = pneg %p243
      %p250 = scmp.eq.s32.totalorder %s19, 1
      %p251 = por %p249, %p250
      %p252 = scmp.ne.s32.totalorder %s244, %s247
      %p253 = scmp.eq.s32.totalorder %s19, 0
      %p254 = por %p252, %p253
      %p255 = scmp.ne.s32.totalorder %s244, %s247
      %p256 = scmp.eq.s32.totalorder %s24, 1
      %p257 = por %p255, %p256
      %p258 = scmp.ne.s32.totalorder %s247, %s248
      %p259 = scmp.eq.s32.totalorder %s24, 0
      %p260 = por %p258, %p259
      %p261 = scmp.ne.s32.totalorder %s247, %s248
      %p262 = scmp.eq.s32.totalorder %s25, 1
      %p263 = por %p261, %p262
      %p265 = scmp.ne.s32.totalorder %s248, %s264
      %p266 = scmp.eq.s32.totalorder %s25, 0
      %p267 = por %p265, %p266
      %p268 = scmp.le.s32.totalorder 1, %s19
      %p269 = scmp.lt.s32.totalorder %s19, 3
      %p270 = pnand %p268, %p269
      %p271 = pneg %p270
      // Predicated region
      $region9: #{convnet_forward.1} parent=5 // pred_check
        _
      $region10: #{convnet_forward.1} parent=5 // pred_check_branch
        %273 = sbr.rel (%p270) target = $region12
      $region11: #{convnet_forward.1} parent=5 // pred_region
        %s274 = ssub.s32 %s19, 1
        // Predicated region
        $region13: #{convnet_forward.1} parent=11 // pred_check
          %p275 = pneg %p66
        $region14: #{convnet_forward.1} parent=11 // pred_check_branch
          %277 = sbr.rel (%p275) target = $region16
        $region15: #{convnet_forward.1} parent=11 // pred_region
          _
        $region16: #{convnet_forward.1} parent=11 // pred_fallthru
          _
        // Predicated region
        $region17: #{convnet_forward.1} parent=11 // pred_check
          %p278 = pneg %p87
        $region18: #{convnet_forward.1} parent=11 // pred_check_branch
          %280 = sbr.rel (%p278) target = $region20
        $region19: #{convnet_forward.1} parent=11 // pred_region
          _
        $region20: #{convnet_forward.1} parent=11 // pred_fallthru
          _
        // Predicated region
        $region21: #{convnet_forward.1} parent=11 // pred_check
          %p281 = pneg %p108
        $region22: #{convnet_forward.1} parent=11 // pred_check_branch
          %283 = sbr.rel (%p281) target = $region24
        $region23: #{convnet_forward.1} parent=11 // pred_region
          _
        $region24: #{convnet_forward.1} parent=11 // pred_fallthru
          _
        // Predicated region
        $region25: #{convnet_forward.1} parent=11 // pred_check
          %p284 = pneg %p129
        $region26: #{convnet_forward.1} parent=11 // pred_check_branch
          %286 = sbr.rel (%p284) target = $region28
        $region27: #{convnet_forward.1} parent=11 // pred_region
          _
        $region28: #{convnet_forward.1} parent=11 // pred_fallthru
          _
        // Predicated region
        $region29: #{convnet_forward.1} parent=11 // pred_check
          %p287 = pneg %p150
        $region30: #{convnet_forward.1} parent=11 // pred_check_branch
          %289 = sbr.rel (%p287) target = $region32
        $region31: #{convnet_forward.1} parent=11 // pred_region
          _
        $region32: #{convnet_forward.1} parent=11 // pred_fallthru
          _
        // Predicated region
        $region33: #{convnet_forward.1} parent=11 // pred_check
          %p290 = pneg %p171
        $region34: #{convnet_forward.1} parent=11 // pred_check_branch
          %292 = sbr.rel (%p290) target = $region36
        $region35: #{convnet_forward.1} parent=11 // pred_region
          _
        $region36: #{convnet_forward.1} parent=11 // pred_fallthru
          _
        // Predicated region
        $region37: #{convnet_forward.1} parent=11 // pred_check
          %p293 = pneg %p192
        $region38: #{convnet_forward.1} parent=11 // pred_check_branch
          %295 = sbr.rel (%p293) target = $region40
        $region39: #{convnet_forward.1} parent=11 // pred_region
          _
        $region40: #{convnet_forward.1} parent=11 // pred_fallthru
          _
        // Predicated region
        $region41: #{convnet_forward.1} parent=11 // pred_check
          %p296 = pneg %p213
        $region42: #{convnet_forward.1} parent=11 // pred_check_branch
          %298 = sbr.rel (%p296) target = $region44
        $region43: #{convnet_forward.1} parent=11 // pred_region
          _
        $region44: #{convnet_forward.1} parent=11 // pred_fallthru
          _
        // Predicated region
        $region45: #{convnet_forward.1} parent=11 // pred_check
          %p299 = pneg %p234
        $region46: #{convnet_forward.1} parent=11 // pred_check_branch
          %301 = sbr.rel (%p299) target = $region48
        $region47: #{convnet_forward.1} parent=11 // pred_region
          _
        $region48: #{convnet_forward.1} parent=11 // pred_fallthru
          _
      $region12: #{convnet_forward.1} parent=5 // pred_fallthru
        _
      %p302 = scmp.lt.s32.totalorder %s19, 2
      // Predicated region
      $region49: #{convnet_forward.1} parent=5 // pred_check
        %p303 = pneg %p302
      $region50: #{convnet_forward.1} parent=5 // pred_check_branch
        %305 = sbr.rel (%p303) target = $region52
      $region51: #{convnet_forward.1} parent=5 // pred_region
        // Predicated region
        $region53: #{convnet_forward.1} parent=51 // pred_check
          %p306 = pneg %p39
        $region54: #{convnet_forward.1} parent=51 // pred_check_branch
          %308 = sbr.rel (%p306) target = $region56
        $region55: #{convnet_forward.1} parent=51 // pred_region
          %p309 = scmp.lt.s32.totalorder %s19, 1
          %s310 = scalar_select %p309, %s19, 1
          %s311 = smul.addr %s310, 32
          %s312 = smul.addr %s311, 8
          %s313 = scalar_lea.vmem %s0, %s312
        $region56: #{convnet_forward.1} parent=51 // pred_fallthru
          _
      $region52: #{convnet_forward.1} parent=5 // pred_fallthru
        _
      %p314 = scmp.le.s32.totalorder 1, %s19
      %p315 = scmp.lt.s32.totalorder %s19, 3
      %p316 = pnand %p314, %p315
      %p317 = pneg %p316
      // Predicated region
      $region57: #{convnet_forward.1} parent=5 // pred_check
        _
      $region58: #{convnet_forward.1} parent=5 // pred_check_branch
        %319 = sbr.rel (%p316) target = $region60
      $region59: #{convnet_forward.1} parent=5 // pred_region
        %s320 = ssub.s32 %s19, 1
        %p321 = scmp.lt.s32.totalorder %s24, 1
        %s322 = scalar_select %p321, %s24, 1
        %s323 = smul.addr %s322, 32
        %s324 = smul.addr %s323, 8
        %s325 = scalar_lea.vmem %s0, %s324
        %p326 = pneg %p45
        %p327 = pneg %p42
        %p328 = pneg %p66
        %p329 = pneg %p63
        %p330 = pneg %p87
        %p331 = pneg %p84
        %p332 = pneg %p108
        %p333 = pneg %p105
        %p334 = pneg %p129
        %p335 = pneg %p126
        %p336 = pneg %p150
        %p337 = pneg %p147
        %p338 = pneg %p171
        %p339 = pneg %p168
        %p340 = pneg %p192
        %p341 = pneg %p189
        %p342 = pneg %p213
        %p343 = pneg %p210
        %p344 = pneg %p234
        %p345 = pneg %p231
        %p346 = pneg %p260
        %p347 = pneg %p257
        %s348 = sand.u32 %s247, 1
        %s349 = scalar_lea.sflag [#allocation3], %s348
        %s350 = sand.u32 %s247, 1
        %s351 = scalar_lea.vmem [#allocation2], %s350
        %p352 = scmp.lt.s32.totalorder %s24, 1
        %s353 = scalar_select %p352, %s24, 1
        %s354 = smul.addr %s353, 32
        %s355 = smul.addr %s354, 8
        %s356 = scalar_lea.vmem %s0, %s355
        %v357 = vld [vmem:[%s1] sm:$0xff]
        %v358 = vld [vmem:[%s1 + $0x8] sm:$0xff]
        %v359 = vld [vmem:[%s356] sm:$0xff]
        %v360 = vld [vmem:[%s356 + $0x8] sm:$0xff]
        %v361 = vld [vmem:[%s356 + $0x10] sm:$0xff]
        %v362 = vld [vmem:[%s356 + $0x18] sm:$0xff]
        %v363 = vld [vmem:[%s356 + $0x20] sm:$0xff]
        %v364 = vld [vmem:[%s356 + $0x28] sm:$0xff]
        %v365 = vld [vmem:[%s356 + $0x30] sm:$0xff]
        %v366 = vld [vmem:[%s356 + $0x38] sm:$0xff]
        %v367 = vld [vmem:[%s356 + $0x40] sm:$0xff]
        %v368 = vld [vmem:[%s356 + $0x48] sm:$0xff]
        %v369 = vld [vmem:[%s356 + $0x50] sm:$0xff]
        %v370 = vld [vmem:[%s356 + $0x58] sm:$0xff]
        %v371 = vld [vmem:[%s356 + $0x60] sm:$0xff]
        %v372 = vld [vmem:[%s356 + $0x68] sm:$0xff]
        %v373 = vld [vmem:[%s356 + $0x70] sm:$0xff]
        %v374 = vld [vmem:[%s356 + $0x78] sm:$0xff]
        %v375 = vld [vmem:[%s356 + $0x80] sm:$0xff]
        %v376 = vld [vmem:[%s356 + $0x88] sm:$0xff]
        %v377 = vld [vmem:[%s356 + $0x90] sm:$0xff]
        %v378 = vld [vmem:[%s356 + $0x98] sm:$0xff]
        %v379 = vld [vmem:[%s356 + $0xa0] sm:$0xff]
        %v380 = vld [vmem:[%s356 + $0xa8] sm:$0xff]
        %v381 = vld [vmem:[%s356 + $0xb0] sm:$0xff]
        %v382 = vld [vmem:[%s356 + $0xb8] sm:$0xff]
        %v383 = vld [vmem:[%s356 + $0xc0] sm:$0x7]
        %v384 = vld [vmem:[%s356 + $0xc8] sm:$0x7]
        %v385 = vld [vmem:[%s356 + $0xd0] sm:$0x7]
        %v386 = vld [vmem:[%s356 + $0xd8] sm:$0x7]
        %v387 = vld [vmem:[%s356 + $0xe0] sm:$0x7]
        %v388 = vld [vmem:[%s356 + $0xe8] sm:$0x7]
        %v389 = vld [vmem:[%s356 + $0xf0] sm:$0x7]
        %v390 = vld [vmem:[%s356 + $0xf8] sm:$0x7]
        %vm391 = vcmask 220160
        %v393 = vsel %vm391, %v357, 0
        %v396 = vsel %vm391, %v358, 0
        %vm398 = vcmask 1042432
        %v400 = vsel %vm398, %v383, 0
        %v403 = vsel %vm398, %v384, 0
        %v406 = vsel %vm398, %v385, 0
        %v409 = vsel %vm398, %v386, 0
        %v412 = vsel %vm398, %v387, 0
        %v415 = vsel %vm398, %v388, 0
        %v418 = vsel %vm398, %v389, 0
        %v421 = vsel %vm398, %v390, 0
        %423 = vmatprep.subr.mxu0 %v360
        %424 = vmatpush1.msra.mxu0 %v359
        %425 = vmatprep.subr.mxu0 %v368
        %426 = vmatpush1.msra.mxu0 %v367
        %427 = vmatprep.subr.mxu0 %v376
        %428 = vmatpush1.msra.mxu0 %v375
        %429 = vmatprep.subr.mxu0 %v403
        %430 = vmatpush1.msra.mxu0 %v400
        %431 = vmatprep.subr.mxu0 0.0
        %432 = vmatpush1.msra.mxu0 0.0
        %433 = vmatprep.subr.mxu0 0.0
        %434 = vmatpush1.msra.mxu0 0.0
        %435 = vmatprep.subr.mxu0 0.0
        %436 = vmatpush1.msra.mxu0 0.0
        %437 = vmatprep.subr.mxu0 0.0
        %438 = vmatpush1.msra.mxu0 0.0
        %439 = vmatprep.subr.mxu0 0.0
        %440 = vmatpush1.msra.mxu0 0.0
        %441 = vmatprep.subr.mxu0 0.0
        %442 = vmatpush1.msra.mxu0 0.0
        %443 = vmatprep.subr.mxu0 0.0
        %444 = vmatpush1.msra.mxu0 0.0
        %445 = vmatprep.subr.mxu0 0.0
        %446 = vmatpush1.msra.mxu0 0.0
        %447 = vmatprep.subr.mxu0 0.0
        %448 = vmatpush1.msra.mxu0 0.0
        %449 = vmatprep.subr.mxu0 0.0
        %450 = vmatpush1.msra.mxu0 0.0
        %451 = vmatprep.subr.mxu0 0.0
        %452 = vmatpush1.msra.mxu0 0.0
        %453 = vmatprep.subr.mxu0 0.0
        %454 = vmatpush1.msra.mxu0 0.0
        %455 = vmatprep.subr.mxu0 0.0
        %456 = vmatpush1.msra.mxu0 0.0
        %457 = vmatprep.subr.mxu0 0.0
        %458 = vmatpush1.msra.mxu0 0.0
        %459 = vmatprep.subr.mxu0 0.0
        %460 = vmatpush1.msra.mxu0 0.0
        %461 = vmatprep.subr.mxu0 0.0
        %462 = vmatpush1.msra.mxu0 0.0
        %463 = vmatprep.subr.mxu0 0.0
        %464 = vmatpush1.msra.mxu0 0.0
        %465 = vmatprep.subr.mxu0 0.0
        %466 = vmatpush1.msra.mxu0 0.0
        %467 = vmatprep.subr.mxu0 0.0
        %468 = vmatpush1.msra.mxu0 0.0
        %469 = vmatprep.subr.mxu0 0.0
        %470 = vmatpush1.msra.mxu0 0.0
        %471 = vmatprep.subr.mxu0 0.0
        %472 = vmatpush1.msra.mxu0 0.0
        %473 = vmatprep.subr.mxu0 0.0
        %474 = vmatpush1.msra.mxu0 0.0
        %475 = vmatprep.subr.mxu0 0.0
        %476 = vmatpush1.msra.mxu0 0.0
        %477 = vmatprep.subr.mxu0 0.0
        %478 = vmatpush1.msra.mxu0 0.0
        %479 = vmatprep.subr.mxu0 0.0
        %480 = vmatpush1.msra.mxu0 0.0
        %481 = vmatprep.subr.mxu0 0.0
        %482 = vmatpush1.msra.mxu0 0.0
        %483 = vmatprep.subr.mxu0 0.0
        %484 = vmatpush1.msra.mxu0 0.0
        %485 = vmatprep.subr.mxu0 0.0
        %486 = vmatpush1.msra.mxu0 0.0
        %487 = vmatprep.mubr.f32.mxu0 0.0
        %488 = vmatmul.mubr.f32.gmra.mrb[0].mxu0 %v393
        %v489 = vpop.f32.mrb[0].mxu0
        %v490 = vadd.f32 0.0, %v489
        %v491 = vpop.f32.mrb[0].mxu0
        %v492 = vadd.f32 0.0, %v491
        %493 = vmatprep.mubr.f32.mxu0 0.0
        %494 = vmatmul.mubr.f32.gmra.mrb[0].mxu0 %v396
        %v495 = vpop.f32.mrb[0].mxu0
        %v496 = vadd.f32 0.0, %v495
        %v497 = vpop.f32.mrb[0].mxu0
        %v498 = vadd.f32 0.0, %v497
        %499 = vdwg.mxu0
        %500 = vmatprep.subr.mxu0 %v362
        %501 = vmatpush1.msra.mxu0 %v361
        %502 = vmatprep.subr.mxu0 %v370
        %503 = vmatpush1.msra.mxu0 %v369
        %504 = vmatprep.subr.mxu0 %v378
        %505 = vmatpush1.msra.mxu0 %v377
        %506 = vmatprep.subr.mxu0 %v409
        %507 = vmatpush1.msra.mxu0 %v406
        %508 = vmatprep.subr.mxu0 0.0
        %509 = vmatpush1.msra.mxu0 0.0
        %510 = vmatprep.subr.mxu0 0.0
        %511 = vmatpush1.msra.mxu0 0.0
        %512 = vmatprep.subr.mxu0 0.0
        %513 = vmatpush1.msra.mxu0 0.0
        %514 = vmatprep.subr.mxu0 0.0
        %515 = vmatpush1.msra.mxu0 0.0
        %516 = vmatprep.subr.mxu0 0.0
        %517 = vmatpush1.msra.mxu0 0.0
        %518 = vmatprep.subr.mxu0 0.0
        %519 = vmatpush1.msra.mxu0 0.0
        %520 = vmatprep.subr.mxu0 0.0
        %521 = vmatpush1.msra.mxu0 0.0
        %522 = vmatprep.subr.mxu0 0.0
        %523 = vmatpush1.msra.mxu0 0.0
        %524 = vmatprep.subr.mxu0 0.0
        %525 = vmatpush1.msra.mxu0 0.0
        %526 = vmatprep.subr.mxu0 0.0
        %527 = vmatpush1.msra.mxu0 0.0
        %528 = vmatprep.subr.mxu0 0.0
        %529 = vmatpush1.msra.mxu0 0.0
        %530 = vmatprep.subr.mxu0 0.0
        %531 = vmatpush1.msra.mxu0 0.0
        %532 = vmatprep.subr.mxu0 0.0
        %533 = vmatpush1.msra.mxu0 0.0
        %534 = vmatprep.subr.mxu0 0.0
        %535 = vmatpush1.msra.mxu0 0.0
        %536 = vmatprep.subr.mxu0 0.0
        %537 = vmatpush1.msra.mxu0 0.0
        %538 = vmatprep.subr.mxu0 0.0
        %539 = vmatpush1.msra.mxu0 0.0
        %540 = vmatprep.subr.mxu0 0.0
        %541 = vmatpush1.msra.mxu0 0.0
        %542 = vmatprep.subr.mxu0 0.0
        %543 = vmatpush1.msra.mxu0 0.0
        %544 = vmatprep.subr.mxu0 0.0
        %545 = vmatpush1.msra.mxu0 0.0
        %546 = vmatprep.subr.mxu0 0.0
        %547 = vmatpush1.msra.mxu0 0.0
        %548 = vmatprep.subr.mxu0 0.0
        %549 = vmatpush1.msra.mxu0 0.0
        %550 = vmatprep.subr.mxu0 0.0
        %551 = vmatpush1.msra.mxu0 0.0
        %552 = vmatprep.subr.mxu0 0.0
        %553 = vmatpush1.msra.mxu0 0.0
        %554 = vmatprep.subr.mxu0 0.0
        %555 = vmatpush1.msra.mxu0 0.0
        %556 = vmatprep.subr.mxu0 0.0
        %557 = vmatpush1.msra.mxu0 0.0
        %558 = vmatprep.subr.mxu0 0.0
        %559 = vmatpush1.msra.mxu0 0.0
        %560 = vmatprep.subr.mxu0 0.0
        %561 = vmatpush1.msra.mxu0 0.0
        %562 = vmatprep.subr.mxu0 0.0
        %563 = vmatpush1.msra.mxu0 0.0
        %564 = vmatprep.mubr.f32.mxu0 0.0
        %565 = vmatmul.mubr.f32.gmra.mrb[0].mxu0 %v393
        %v566 = vpop.f32.mrb[0].mxu0
        %v567 = vadd.f32 0.0, %v566
        %v568 = vpop.f32.mrb[0].mxu0
        %v569 = vadd.f32 0.0, %v568
        %570 = vmatprep.mubr.f32.mxu0 0.0
        %571 = vmatmul.mubr.f32.gmra.mrb[0].mxu0 %v396
        %v572 = vpop.f32.mrb[0].mxu0
        %v573 = vadd.f32 0.0, %v572
        %v574 = vpop.f32.mrb[0].mxu0
        %v575 = vadd.f32 0.0, %v574
        %576 = vdwg.mxu0
        %577 = vmatprep.subr.mxu0 %v364
        %578 = vmatpush1.msra.mxu0 %v363
        %579 = vmatprep.subr.mxu0 %v372
        %580 = vmatpush1.msra.mxu0 %v371
        %581 = vmatprep.subr.mxu0 %v380
        %582 = vmatpush1.msra.mxu0 %v379
        %583 = vmatprep.subr.mxu0 %v415
        %584 = vmatpush1.msra.mxu0 %v412
        %585 = vmatprep.subr.mxu0 0.0
        %586 = vmatpush1.msra.mxu0 0.0
        %587 = vmatprep.subr.mxu0 0.0
        %588 = vmatpush1.msra.mxu0 0.0
        %589 = vmatprep.subr.mxu0 0.0
        %590 = vmatpush1.msra.mxu0 0.0
        %591 = vmatprep.subr.mxu0 0.0
        %592 = vmatpush1.msra.mxu0 0.0
        %593 = vmatprep.subr.mxu0 0.0
        %594 = vmatpush1.msra.mxu0 0.0
        %595 = vmatprep.subr.mxu0 0.0
        %596 = vmatpush1.msra.mxu0 0.0
        %597 = vmatprep.subr.mxu0 0.0
        %598 = vmatpush1.msra.mxu0 0.0
        %599 = vmatprep.subr.mxu0 0.0
        %600 = vmatpush1.msra.mxu0 0.0
        %601 = vmatprep.subr.mxu0 0.0
        %602 = vmatpush1.msra.mxu0 0.0
        %603 = vmatprep.subr.mxu0 0.0
        %604 = vmatpush1.msra.mxu0 0.0
        %605 = vmatprep.subr.mxu0 0.0
        %606 = vmatpush1.msra.mxu0 0.0
        %607 = vmatprep.subr.mxu0 0.0
        %608 = vmatpush1.msra.mxu0 0.0
        %609 = vmatprep.subr.mxu0 0.0
        %610 = vmatpush1.msra.mxu0 0.0
        %611 = vmatprep.subr.mxu0 0.0
        %612 = vmatpush1.msra.mxu0 0.0
        %613 = vmatprep.subr.mxu0 0.0
        %614 = vmatpush1.msra.mxu0 0.0
        %615 = vmatprep.subr.mxu0 0.0
        %616 = vmatpush1.msra.mxu0 0.0
        %617 = vmatprep.subr.mxu0 0.0
        %618 = vmatpush1.msra.mxu0 0.0
        %619 = vmatprep.subr.mxu0 0.0
        %620 = vmatpush1.msra.mxu0 0.0
        %621 = vmatprep.subr.mxu0 0.0
        %622 = vmatpush1.msra.mxu0 0.0
        %623 = vmatprep.subr.mxu0 0.0
        %624 = vmatpush1.msra.mxu0 0.0
        %625 = vmatprep.subr.mxu0 0.0
        %626 = vmatpush1.msra.mxu0 0.0
        %627 = vmatprep.subr.mxu0 0.0
        %628 = vmatpush1.msra.mxu0 0.0
        %629 = vmatprep.subr.mxu0 0.0
        %630 = vmatpush1.msra.mxu0 0.0
        %631 = vmatprep.subr.mxu0 0.0
        %632 = vmatpush1.msra.mxu0 0.0
        %633 = vmatprep.subr.mxu0 0.0
        %634 = vmatpush1.msra.mxu0 0.0
        %635 = vmatprep.subr.mxu0 0.0
        %636 = vmatpush1.msra.mxu0 0.0
        %637 = vmatprep.subr.mxu0 0.0
        %638 = vmatpush1.msra.mxu0 0.0
        %639 = vmatprep.subr.mxu0 0.0
        %640 = vmatpush1.msra.mxu0 0.0
        %641 = vmatprep.mubr.f32.mxu0 0.0
        %642 = vmatmul.mubr.f32.gmra.mrb[0].mxu0 %v393
        %v643 = vpop.f32.mrb[0].mxu0
        %v644 = vadd.f32 0.0, %v643
        %v645 = vpop.f32.mrb[0].mxu0
        %v646 = vadd.f32 0.0, %v645
        %647 = vmatprep.mubr.f32.mxu0 0.0
        %648 = vmatmul.mubr.f32.gmra.mrb[0].mxu0 %v396
        %v649 = vpop.f32.mrb[0].mxu0
        %v650 = vadd.f32 0.0, %v649
        %v651 = vpop.f32.mrb[0].mxu0
        %v652 = vadd.f32 0.0, %v651
        %653 = vdwg.mxu0
        %654 = vmatprep.subr.mxu0 %v366
        %655 = vmatpush1.msra.mxu0 %v365
        %656 = vmatprep.subr.mxu0 %v374
        %657 = vmatpush1.msra.mxu0 %v373
        %658 = vmatprep.subr.mxu0 %v382
        %659 = vmatpush1.msra.mxu0 %v381
        %660 = vmatprep.subr.mxu0 %v421
        %661 = vmatpush1.msra.mxu0 %v418
        %662 = vmatprep.subr.mxu0 0.0
        %663 = vmatpush1.msra.mxu0 0.0
        %664 = vmatprep.subr.mxu0 0.0
        %665 = vmatpush1.msra.mxu0 0.0
        %666 = vmatprep.subr.mxu0 0.0
        %667 = vmatpush1.msra.mxu0 0.0
        %668 = vmatprep.subr.mxu0 0.0
        %669 = vmatpush1.msra.mxu0 0.0
        %670 = vmatprep.subr.mxu0 0.0
        %671 = vmatpush1.msra.mxu0 0.0
        %672 = vmatprep.subr.mxu0 0.0
        %673 = vmatpush1.msra.mxu0 0.0
        %674 = vmatprep.subr.mxu0 0.0
        %675 = vmatpush1.msra.mxu0 0.0
        %676 = vmatprep.subr.mxu0 0.0
        %677 = vmatpush1.msra.mxu0 0.0
        %678 = vmatprep.subr.mxu0 0.0
        %679 = vmatpush1.msra.mxu0 0.0
        %680 = vmatprep.subr.mxu0 0.0
        %681 = vmatpush1.msra.mxu0 0.0
        %682 = vmatprep.subr.mxu0 0.0
        %683 = vmatpush1.msra.mxu0 0.0
        %684 = vmatprep.subr.mxu0 0.0
        %685 = vmatpush1.msra.mxu0 0.0
        %686 = vmatprep.subr.mxu0 0.0
        %687 = vmatpush1.msra.mxu0 0.0
        %688 = vmatprep.subr.mxu0 0.0
        %689 = vmatpush1.msra.mxu0 0.0
        %690 = vmatprep.subr.mxu0 0.0
        %691 = vmatpush1.msra.mxu0 0.0
        %692 = vmatprep.subr.mxu0 0.0
        %693 = vmatpush1.msra.mxu0 0.0
        %694 = vmatprep.subr.mxu0 0.0
        %695 = vmatpush1.msra.mxu0 0.0
        %696 = vmatprep.subr.mxu0 0.0
        %697 = vmatpush1.msra.mxu0 0.0
        %698 = vmatprep.subr.mxu0 0.0
        %699 = vmatpush1.msra.mxu0 0.0
        %700 = vmatprep.subr.mxu0 0.0
        %701 = vmatpush1.msra.mxu0 0.0
        %702 = vmatprep.subr.mxu0 0.0
        %703 = vmatpush1.msra.mxu0 0.0
        %704 = vmatprep.subr.mxu0 0.0
        %705 = vmatpush1.msra.mxu0 0.0
        %706 = vmatprep.subr.mxu0 0.0
        %707 = vmatpush1.msra.mxu0 0.0
        %708 = vmatprep.subr.mxu0 0.0
        %709 = vmatpush1.msra.mxu0 0.0
        %710 = vmatprep.subr.mxu0 0.0
        %711 = vmatpush1.msra.mxu0 0.0
        %712 = vmatprep.subr.mxu0 0.0
        %713 = vmatpush1.msra.mxu0 0.0
        %714 = vmatprep.subr.mxu0 0.0
        %715 = vmatpush1.msra.mxu0 0.0
        %716 = vmatprep.subr.mxu0 0.0
        %717 = vmatpush1.msra.mxu0 0.0
        %718 = vmatprep.mubr.f32.mxu0 0.0
        %719 = vmatmul.mubr.f32.gmra.mrb[0].mxu0 %v393
        %v720 = vpop.f32.mrb[0].mxu0
        %v721 = vadd.f32 0.0, %v720
        %v722 = vpop.f32.mrb[0].mxu0
        %v723 = vadd.f32 0.0, %v722
        %724 = vmatprep.mubr.f32.mxu0 0.0
        %725 = vmatmul.mubr.f32.gmra.mrb[0].mxu0 %v396
        %v726 = vpop.f32.mrb[0].mxu0
        %v727 = vadd.f32 0.0, %v726
        %v728 = vpop.f32.mrb[0].mxu0
        %v729 = vadd.f32 0.0, %v728
        %730 = vdwg.mxu0
        %v731 = vmax.f32 %v490, %v567
        %v732 = vmax.f32 %v492, %v569
        %v733 = vmax.f32 %v496, %v573
        %v734 = vmax.f32 %v498, %v575
        %v735 = vmax.f32 %v644, %v721
        %v736 = vmax.f32 %v646, %v723
        %v737 = vmax.f32 %v650, %v727
        %v738 = vmax.f32 %v652, %v729
        %v739 = vmax.f32 %v731, %v735
        %v740 = vmax.f32 %v732, %v736
        %v741 = vmax.f32 %v733, %v737
        %v742 = vmax.f32 %v734, %v738
        %v743 = vld [vmem:[%s2] sm:$0xff]
        %v744 = vld [vmem:[%s2 + $0x8] sm:$0xff]
        %746 = vset.pattern.permute.xlu0 0
        %747 = vperm.xlu0 %746, %v743
        %v748 = vpop.permute.xlu0 %747
        %751 = vset.pattern.permute.xlu0 0
        %752 = vperm.xlu0 %751, %v744
        %v753 = vpop.permute.xlu0 %752
        %v755 = vadd.f32 %v739, %v748
        %v756 = vadd.f32 %v740, %v748
        %v757 = vadd.f32 %v741, %v753
        %v758 = vadd.f32 %v742, %v753
        %v759 = vtanh.pop %v755
        %v760 = vtanh.pop %v756
        %v761 = vtanh.pop %v757
        %v762 = vtanh.pop %v758
        %v763 = vlaneseq
        %v764 = vand.u32 %v763, 127
        %v765 = vadd.s32 %v764, 128
        %v766 = vshra.s32 %v764, 4
        %v767 = vshra.s32 %v765, 4
        %v768 = vand.u32 %v764, 15
        %v769 = vand.u32 %v765, 15
        %770 = vrot.lane.b32.xlu0 %v759, 17
        %v771 = vpop.permute.xlu0 %770
        %772 = vrot.lane.b32.xlu0 %v761, 17
        %v773 = vpop.permute.xlu0 %772
        %774 = vrot.lane.b32.xlu0 %v760, 17
        %v775 = vpop.permute.xlu0 %774
        %776 = vrot.lane.b32.xlu0 %v762, 17
        %v777 = vpop.permute.xlu0 %776
        %vm778 = vcmp.lt.s32.totalorder %v764, 17
        %v779 = vsel %vm778, %v771, %v775
        %v780 = vsel %vm778, %v773, %v777
        %v781 = vsel %vm778, %v775, %v771
        %v782 = vsel %vm778, %v777, %v773
        %vm783 = vcmp.ge.s32.totalorder %v766, 1
        %vm784 = vcmp.ge.s32.totalorder %v767, 1
        %vm785 = vcmp.lt.s32.totalorder %v766, 17
        %vm786 = vcmp.lt.s32.totalorder %v767, 17
        %vm787 = vmand %vm783, %vm785
        %vm788 = vmand %vm784, %vm786
        %vm789 = vcmp.ge.s32.totalorder %v768, 1
        %vm790 = vcmp.ge.s32.totalorder %v769, 1
        %vm791 = vmand %vm787, %vm789
        %vm792 = vmand %vm788, %vm790
        %vm793 = vcmp.lt.s32.totalorder %v768, 17
        %vm794 = vcmp.lt.s32.totalorder %v769, 17
        %vm795 = vmand %vm791, %vm793
        %vm796 = vmand %vm792, %vm794
        %v797 = vsel %vm795, 1, 0
        %v798 = vsel %vm796, 1, 0
        %vm799 = vcmp.eq.s32.totalorder %v797, 1
        %vm800 = vcmp.eq.s32.totalorder %v798, 1
        %v801 = vsel %vm799, %v781, 0.0
        %v802 = vsel %vm800, %v779, 0.0
        %v803 = vsel %vm799, %v782, 0.0
        %v804 = vsel %vm800, %v780, 0.0
        %805 = vrot.lane.b32.xlu0 %v759, 16
        %v806 = vpop.permute.xlu0 %805
        %807 = vrot.lane.b32.xlu0 %v761, 16
        %v808 = vpop.permute.xlu0 %807
        %809 = vrot.lane.b32.xlu0 %v760, 16
        %v810 = vpop.permute.xlu0 %809
        %811 = vrot.lane.b32.xlu0 %v762, 16
        %v812 = vpop.permute.xlu0 %811
        %vm813 = vcmp.lt.s32.totalorder %v764, 16
        %v814 = vsel %vm813, %v806, %v810
        %v815 = vsel %vm813, %v808, %v812
        %v816 = vsel %vm813, %v810, %v806
        %v817 = vsel %vm813, %v812, %v808
        %vm818 = vcmp.ge.s32.totalorder %v768, 0
        %vm819 = vcmp.ge.s32.totalorder %v769, 0
        %vm820 = vmand %vm787, %vm818
        %vm821 = vmand %vm788, %vm819
        %vm822 = vcmp.lt.s32.totalorder %v768, 16
        %vm823 = vcmp.lt.s32.totalorder %v769, 16
        %vm824 = vmand %vm820, %vm822
        %vm825 = vmand %vm821, %vm823
        %v826 = vsel %vm824, 1, 0
        %v827 = vsel %vm825, 1, 0
        %vm828 = vcmp.eq.s32.totalorder %v826, 1
        %vm829 = vcmp.eq.s32.totalorder %v827, 1
        %v830 = vsel %vm828, %v816, 0.0
        %v831 = vsel %vm829, %v814, 0.0
        %v832 = vsel %vm828, %v817, 0.0
        %v833 = vsel %vm829, %v815, 0.0
        %834 = vrot.lane.b32.xlu0 %v759, 15
        %v835 = vpop.permute.xlu0 %834
        %836 = vrot.lane.b32.xlu0 %v761, 15
        %v837 = vpop.permute.xlu0 %836
        %838 = vrot.lane.b32.xlu0 %v760, 15
        %v839 = vpop.permute.xlu0 %838
        %840 = vrot.lane.b32.xlu0 %v762, 15
        %v841 = vpop.permute.xlu0 %840
        %vm842 = vcmp.lt.s32.totalorder %v764, 15
        %v843 = vsel %vm842, %v835, %v839
        %v844 = vsel %vm842, %v837, %v841
        %v845 = vsel %vm842, %v839, %v835
        %v846 = vsel %vm842, %v841, %v837
        %vm847 = vcmp.ge.s32.totalorder %v768, 4294967295
        %vm848 = vcmp.ge.s32.totalorder %v769, 4294967295
        %vm849 = vmand %vm787, %vm847
        %vm850 = vmand %vm788, %vm848
        %vm851 = vcmp.lt.s32.totalorder %v768, 15
        %vm852 = vcmp.lt.s32.totalorder %v769, 15
        %vm853 = vmand %vm849, %vm851
        %vm854 = vmand %vm850, %vm852
        %v855 = vsel %vm853, 1, 0
        %v856 = vsel %vm854, 1, 0
        %vm857 = vcmp.eq.s32.totalorder %v855, 1
        %vm858 = vcmp.eq.s32.totalorder %v856, 1
        %v859 = vsel %vm857, %v845, 0.0
        %v860 = vsel %vm858, %v843, 0.0
        %v861 = vsel %vm857, %v846, 0.0
        %v862 = vsel %vm858, %v844, 0.0
        %863 = vrot.lane.b32.xlu0 %v759, 1
        %v864 = vpop.permute.xlu0 %863
        %865 = vrot.lane.b32.xlu0 %v761, 1
        %v866 = vpop.permute.xlu0 %865
        %867 = vrot.lane.b32.xlu0 %v760, 1
        %v868 = vpop.permute.xlu0 %867
        %869 = vrot.lane.b32.xlu0 %v762, 1
        %v870 = vpop.permute.xlu0 %869
        %vm871 = vcmp.lt.s32.totalorder %v764, 1
        %v872 = vsel %vm871, %v864, %v868
        %v873 = vsel %vm871, %v866, %v870
        %v874 = vsel %vm871, %v868, %v864
        %v875 = vsel %vm871, %v870, %v866
        %vm876 = vcmp.ge.s32.totalorder %v766, 0
        %vm877 = vcmp.ge.s32.totalorder %v767, 0
        %vm878 = vcmp.lt.s32.totalorder %v766, 16
        %vm879 = vcmp.lt.s32.totalorder %v767, 16
        %vm880 = vmand %vm876, %vm878
        %vm881 = vmand %vm877, %vm879
        %vm882 = vmand %vm880, %vm789
        %vm883 = vmand %vm881, %vm790
        %vm884 = vmand %vm882, %vm793
        %vm885 = vmand %vm883, %vm794
        %v886 = vsel %vm884, 1, 0
        %v887 = vsel %vm885, 1, 0
        %vm888 = vcmp.eq.s32.totalorder %v886, 1
        %vm889 = vcmp.eq.s32.totalorder %v887, 1
        %v890 = vsel %vm888, %v874, 0.0
        %v891 = vsel %vm889, %v872, 0.0
        %v892 = vsel %vm888, %v875, 0.0
        %v893 = vsel %vm889, %v873, 0.0
        %vm894 = vmand %vm880, %vm818
        %vm895 = vmand %vm881, %vm819
        %vm896 = vmand %vm894, %vm822
        %vm897 = vmand %vm895, %vm823
        %v898 = vsel %vm896, 1, 0
        %v899 = vsel %vm897, 1, 0
        %vm900 = vcmp.eq.s32.totalorder %v898, 1
        %vm901 = vcmp.eq.s32.totalorder %v899, 1
        %v902 = vsel %vm900, %v759, 0.0
        %v903 = vsel %vm901, %v760, 0.0
        %v904 = vsel %vm900, %v761, 0.0
        %v905 = vsel %vm901, %v762, 0.0
        %906 = vrot.lane.b32.xlu0 %v759, 127
        %v907 = vpop.permute.xlu0 %906
        %908 = vrot.lane.b32.xlu0 %v761, 127
        %v909 = vpop.permute.xlu0 %908
        %910 = vrot.lane.b32.xlu0 %v760, 127
        %v911 = vpop.permute.xlu0 %910
        %912 = vrot.lane.b32.xlu0 %v762, 127
        %v913 = vpop.permute.xlu0 %912
        %vm914 = vcmp.lt.s32.totalorder %v764, 127
        %v915 = vsel %vm914, %v907, %v911
        %v916 = vsel %vm914, %v909, %v913
        %v917 = vsel %vm914, %v911, %v907
        %v918 = vsel %vm914, %v913, %v909
        %vm919 = vmand %vm880, %vm847
        %vm920 = vmand %vm881, %vm848
        %vm921 = vmand %vm919, %vm851
        %vm922 = vmand %vm920, %vm852
        %v923 = vsel %vm921, 1, 0
        %v924 = vsel %vm922, 1, 0
        %vm925 = vcmp.eq.s32.totalorder %v923, 1
        %vm926 = vcmp.eq.s32.totalorder %v924, 1
        %v927 = vsel %vm925, %v915, 0.0
        %v928 = vsel %vm926, %v917, 0.0
        %v929 = vsel %vm925, %v916, 0.0
        %v930 = vsel %vm926, %v918, 0.0
        %931 = vrot.lane.b32.xlu0 %v759, 113
        %v932 = vpop.permute.xlu0 %931
        %933 = vrot.lane.b32.xlu0 %v761, 113
        %v934 = vpop.permute.xlu0 %933
        %935 = vrot.lane.b32.xlu0 %v760, 113
        %v936 = vpop.permute.xlu0 %935
        %937 = vrot.lane.b32.xlu0 %v762, 113
        %v938 = vpop.permute.xlu0 %937
        %vm939 = vcmp.lt.s32.totalorder %v764, 113
        %v940 = vsel %vm939, %v932, %v936
        %v941 = vsel %vm939, %v934, %v938
        %v942 = vsel %vm939, %v936, %v932
        %v943 = vsel %vm939, %v938, %v934
        %vm944 = vcmp.ge.s32.totalorder %v766, 4294967295
        %vm945 = vcmp.ge.s32.totalorder %v767, 4294967295
        %vm946 = vcmp.lt.s32.totalorder %v766, 15
        %vm947 = vcmp.lt.s32.totalorder %v767, 15
        %vm948 = vmand %vm944, %vm946
        %vm949 = vmand %vm945, %vm947
        %vm950 = vmand %vm948, %vm789
        %vm951 = vmand %vm949, %vm790
        %vm952 = vmand %vm950, %vm793
        %vm953 = vmand %vm951, %vm794
        %v954 = vsel %vm952, 1, 0
        %v955 = vsel %vm953, 1, 0
        %vm956 = vcmp.eq.s32.totalorder %v954, 1
        %vm957 = vcmp.eq.s32.totalorder %v955, 1
        %v958 = vsel %vm956, %v940, 0.0
        %v959 = vsel %vm957, %v942, 0.0
        %v960 = vsel %vm956, %v941, 0.0
        %v961 = vsel %vm957, %v943, 0.0
        %962 = vrot.lane.b32.xlu0 %v759, 112
        %v963 = vpop.permute.xlu0 %962
        %964 = vrot.lane.b32.xlu0 %v761, 112
        %v965 = vpop.permute.xlu0 %964
        %966 = vrot.lane.b32.xlu0 %v760, 112
        %v967 = vpop.permute.xlu0 %966
        %968 = vrot.lane.b32.xlu0 %v762, 112
        %v969 = vpop.permute.xlu0 %968
        %vm970 = vcmp.lt.s32.totalorder %v764, 112
        %v971 = vsel %vm970, %v963, %v967
        %v972 = vsel %vm970, %v965, %v969
        %v973 = vsel %vm970, %v967, %v963
        %v974 = vsel %vm970, %v969, %v965
        %vm975 = vmand %vm948, %vm818
        %vm976 = vmand %vm949, %vm819
        %vm977 = vmand %vm975, %vm822
        %vm978 = vmand %vm976, %vm823
        %v979 = vsel %vm977, 1, 0
        %v980 = vsel %vm978, 1, 0
        %vm981 = vcmp.eq.s32.totalorder %v979, 1
        %vm982 = vcmp.eq.s32.totalorder %v980, 1
        %v983 = vsel %vm981, %v971, 0.0
        %v984 = vsel %vm982, %v973, 0.0
        %v985 = vsel %vm981, %v972, 0.0
        %v986 = vsel %vm982, %v974, 0.0
        %987 = vrot.lane.b32.xlu0 %v759, 111
        %v988 = vpop.permute.xlu0 %987
        %989 = vrot.lane.b32.xlu0 %v761, 111
        %v990 = vpop.permute.xlu0 %989
        %991 = vrot.lane.b32.xlu0 %v760, 111
        %v992 = vpop.permute.xlu0 %991
        %993 = vrot.lane.b32.xlu0 %v762, 111
        %v994 = vpop.permute.xlu0 %993
        %vm995 = vcmp.lt.s32.totalorder %v764, 111
        %v996 = vsel %vm995, %v988, %v992
        %v997 = vsel %vm995, %v990, %v994
        %v998 = vsel %vm995, %v992, %v988
        %v999 = vsel %vm995, %v994, %v990
        %vm1000 = vmand %vm948, %vm847
        %vm1001 = vmand %vm949, %vm848
        %vm1002 = vmand %vm1000, %vm851
        %vm1003 = vmand %vm1001, %vm852
        %v1004 = vsel %vm1002, 1, 0
        %v1005 = vsel %vm1003, 1, 0
        %vm1006 = vcmp.eq.s32.totalorder %v1004, 1
        %vm1007 = vcmp.eq.s32.totalorder %v1005, 1
        %v1008 = vsel %vm1006, %v996, 0.0
        %v1009 = vsel %vm1007, %v998, 0.0
        %v1010 = vsel %vm1006, %v997, 0.0
        %v1011 = vsel %vm1007, %v999, 0.0
        %v1012 = vld [vmem:[%s3] sm:$0xff]
        %v1013 = vld [vmem:[%s3 + $0x8] sm:$0xff]
        %vm1014 = vcmask 130048
        %v1016 = vsel %vm1014, %v1013, 0
        %1018 = vmatprep.subr.mxu0 %v802
        %1019 = vmatpush1.msra.mxu0 %v801
        %1020 = vmatprep.subr.mxu0 %v804
        %1021 = vmatpush1.msra.mxu0 %v803
        %1022 = vmatprep.subr.mxu0 %v831
        %1023 = vmatpush1.msra.mxu0 %v830
        %1024 = vmatprep.subr.mxu0 %v833
        %1025 = vmatpush1.msra.mxu0 %v832
        %1026 = vmatprep.subr.mxu0 %v860
        %1027 = vmatpush1.msra.mxu0 %v859
        %1028 = vmatprep.subr.mxu0 %v862
        %1029 = vmatpush1.msra.mxu0 %v861
        %1030 = vmatprep.subr.mxu0 %v891
        %1031 = vmatpush1.msra.mxu0 %v890
        %1032 = vmatprep.subr.mxu0 %v893
        %1033 = vmatpush1.msra.mxu0 %v892
        %1034 = vmatprep.subr.mxu0 %v903
        %1035 = vmatpush1.msra.mxu0 %v902
        %1036 = vmatprep.subr.mxu0 %v905
        %1037 = vmatpush1.msra.mxu0 %v904
        %1038 = vmatprep.subr.mxu0 %v928
        %1039 = vmatpush1.msra.mxu0 %v927
        %1040 = vmatprep.subr.mxu0 %v930
        %1041 = vmatpush1.msra.mxu0 %v929
        %1042 = vmatprep.subr.mxu0 %v959
        %1043 = vmatpush1.msra.mxu0 %v958
        %1044 = vmatprep.subr.mxu0 %v961
        %1045 = vmatpush1.msra.mxu0 %v960
        %1046 = vmatprep.subr.mxu0 %v984
        %1047 = vmatpush1.msra.mxu0 %v983
        %1048 = vmatprep.subr.mxu0 %v986
        %1049 = vmatpush1.msra.mxu0 %v985
        %1050 = vmatprep.subr.mxu0 %v1009
        %1051 = vmatpush1.msra.mxu0 %v1008
        %1052 = vmatprep.subr.mxu0 %v1011
        %1053 = vmatpush1.msra.mxu0 %v1010
        %1054 = vmatprep.subr.mxu0 0.0
        %1055 = vmatpush1.msra.mxu0 0.0
        %1056 = vmatprep.subr.mxu0 0.0
        %1057 = vmatpush1.msra.mxu0 0.0
        %1058 = vmatprep.subr.mxu0 0.0
        %1059 = vmatpush1.msra.mxu0 0.0
        %1060 = vmatprep.subr.mxu0 0.0
        %1061 = vmatpush1.msra.mxu0 0.0
        %1062 = vmatprep.subr.mxu0 0.0
        %1063 = vmatpush1.msra.mxu0 0.0
        %1064 = vmatprep.subr.mxu0 0.0
        %1065 = vmatpush1.msra.mxu0 0.0
        %1066 = vmatprep.subr.mxu0 0.0
        %1067 = vmatpush1.msra.mxu0 0.0
        %1068 = vmatprep.subr.mxu0 0.0
        %1069 = vmatpush1.msra.mxu0 0.0
        %1070 = vmatprep.subr.mxu0 0.0
        %1071 = vmatpush1.msra.mxu0 0.0
        %1072 = vmatprep.subr.mxu0 0.0
        %1073 = vmatpush1.msra.mxu0 0.0
        %1074 = vmatprep.subr.mxu0 0.0
        %1075 = vmatpush1.msra.mxu0 0.0
        %1076 = vmatprep.subr.mxu0 0.0
        %1077 = vmatpush1.msra.mxu0 0.0
        %1078 = vmatprep.subr.mxu0 0.0
        %1079 = vmatpush1.msra.mxu0 0.0
        %1080 = vmatprep.subr.mxu0 0.0
        %1081 = vmatpush1.msra.mxu0 0.0
        %1082 = vmatprep.mubr.f32.mxu0 %v1016
        %1083 = vmatmul.mubr.f32.gmra.mrb[0].mxu0 %v1012
        %v1084 = vpop.f32.mrb[0].mxu0
        %v1085 = vadd.f32 0.0, %v1084
        %v1086 = vpop.f32.mrb[0].mxu0
        %v1087 = vadd.f32 0.0, %v1086
        %1088 = vdwg.mxu0
        %1089 = vrot.lane.b32.xlu0 %v1085, 127
        %v1090 = vpop.permute.xlu0 %1089
        %1091 = vrot.lane.b32.xlu0 %v1087, 127
        %v1092 = vpop.permute.xlu0 %1091
        %v1093 = vsel %vm914, %v1090, %v1092
        %v1094 = vsel %vm914, %v1092, %v1090
        %v1095 = vmax.f32 %v1085, %v1093
        %v1096 = vmax.f32 %v1087, %v1094
        %1097 = vrot.lane.b32.xlu0 %v1085, 112
        %v1098 = vpop.permute.xlu0 %1097
        %1099 = vrot.lane.b32.xlu0 %v1087, 112
        %v1100 = vpop.permute.xlu0 %1099
        %v1101 = vsel %vm970, %v1098, %v1100
        %v1102 = vsel %vm970, %v1100, %v1098
        %1103 = vrot.lane.b32.xlu0 %v1085, 111
        %v1104 = vpop.permute.xlu0 %1103
        %1105 = vrot.lane.b32.xlu0 %v1087, 111
        %v1106 = vpop.permute.xlu0 %1105
        %v1107 = vsel %vm995, %v1104, %v1106
        %v1108 = vsel %vm995, %v1106, %v1104
        %v1109 = vmax.f32 %v1101, %v1107
        %v1110 = vmax.f32 %v1102, %v1108
        %v1111 = vmax.f32 %v1095, %v1109
        %v1112 = vmax.f32 %v1096, %v1110
        %v1113 = vld [vmem:[%s5] sm:$0xff]
        %v1114 = vld [vmem:[%s5 + $0x8] sm:$0xff]
        %v1115 = vld [vmem:[%s5 + $0x10] sm:$0xff]
        %v1116 = vld [vmem:[%s5 + $0x18] sm:$0xff]
        %v1117 = vld [vmem:[%s5 + $0x20] sm:$0xff]
        %v1118 = vld [vmem:[%s5 + $0x28] sm:$0xff]
        %v1119 = vld [vmem:[%s5 + $0x30] sm:$0xff]
        %v1120 = vld [vmem:[%s5 + $0x38] sm:$0xff]
        %v1121 = vld [vmem:[%s5 + $0x40] sm:$0xff]
        %v1122 = vld [vmem:[%s5 + $0x48] sm:$0xff]
        %v1123 = vld [vmem:[%s5 + $0x50] sm:$0xff]
        %v1124 = vld [vmem:[%s5 + $0x58] sm:$0xff]
        %v1125 = vld [vmem:[%s5 + $0x60] sm:$0xff]
        %v1126 = vld [vmem:[%s5 + $0x68] sm:$0xff]
        %v1127 = vld [vmem:[%s5 + $0x70] sm:$0xff]
        %v1128 = vld [vmem:[%s5 + $0x78] sm:$0xff]
        %v1129 = vld [vmem:[%s5 + $0x80] sm:$0xff]
        %v1130 = vld [vmem:[%s5 + $0x88] sm:$0xff]
        %v1131 = vld [vmem:[%s5 + $0x90] sm:$0xff]
        %v1132 = vld [vmem:[%s5 + $0x98] sm:$0xff]
        %v1133 = vld [vmem:[%s5 + $0xa0] sm:$0xff]
        %v1134 = vld [vmem:[%s5 + $0xa8] sm:$0xff]
        %v1135 = vld [vmem:[%s5 + $0xb0] sm:$0xff]
        %v1136 = vld [vmem:[%s5 + $0xb8] sm:$0xff]
        %v1137 = vld [vmem:[%s5 + $0xc0] sm:$0xff]
        %v1138 = vld [vmem:[%s5 + $0xc8] sm:$0xff]
        %v1139 = vld [vmem:[%s5 + $0xd0] sm:$0xff]
        %v1140 = vld [vmem:[%s5 + $0xd8] sm:$0xff]
        %v1141 = vld [vmem:[%s5 + $0xe0] sm:$0xff]
        %v1142 = vld [vmem:[%s5 + $0xe8] sm:$0xff]
        %v1143 = vld [vmem:[%s5 + $0xf0] sm:$0xff]
        %v1144 = vld [vmem:[%s5 + $0xf8] sm:$0xff]
        %v1145 = vld [vmem:[%s4] sm:$0xff]
        %1147 = vset.pattern.permute.xlu0 0
        %1148 = vperm.xlu0 %1147, %v1145
        %v1149 = vpop.permute.xlu0 %1148
        %1151 = vmatprep.subr.mxu0 0.0
        %1152 = vmatpush1.msra.mxu0 %v1113
        %1153 = vmatprep.subr.mxu0 0.0
        %1154 = vmatpush1.msra.mxu0 %v1114
        %1155 = vmatprep.subr.mxu0 0.0
        %1156 = vmatpush1.msra.mxu0 %v1115
        %1157 = vmatprep.subr.mxu0 0.0
        %1158 = vmatpush1.msra.mxu0 %v1116
        %1159 = vmatprep.subr.mxu0 0.0
        %1160 = vmatpush1.msra.mxu0 %v1117
        %1161 = vmatprep.subr.mxu0 0.0
        %1162 = vmatpush1.msra.mxu0 %v1118
        %1163 = vmatprep.subr.mxu0 0.0
        %1164 = vmatpush1.msra.mxu0 %v1119
        %1165 = vmatprep.subr.mxu0 0.0
        %1166 = vmatpush1.msra.mxu0 %v1120
        %1167 = vmatprep.subr.mxu0 0.0
        %1168 = vmatpush1.msra.mxu0 %v1121
        %1169 = vmatprep.subr.mxu0 0.0
        %1170 = vmatpush1.msra.mxu0 %v1122
        %1171 = vmatprep.subr.mxu0 0.0
        %1172 = vmatpush1.msra.mxu0 %v1123
        %1173 = vmatprep.subr.mxu0 0.0
        %1174 = vmatpush1.msra.mxu0 %v1124
        %1175 = vmatprep.subr.mxu0 0.0
        %1176 = vmatpush1.msra.mxu0 %v1125
        %1177 = vmatprep.subr.mxu0 0.0
        %1178 = vmatpush1.msra.mxu0 %v1126
        %1179 = vmatprep.subr.mxu0 0.0
        %1180 = vmatpush1.msra.mxu0 %v1127
        %1181 = vmatprep.subr.mxu0 0.0
        %1182 = vmatpush1.msra.mxu0 %v1128
        %1183 = vmatprep.subr.mxu0 0.0
        %1184 = vmatpush1.msra.mxu0 %v1129
        %1185 = vmatprep.subr.mxu0 0.0
        %1186 = vmatpush1.msra.mxu0 %v1130
        %1187 = vmatprep.subr.mxu0 0.0
        %1188 = vmatpush1.msra.mxu0 %v1131
        %1189 = vmatprep.subr.mxu0 0.0
        %1190 = vmatpush1.msra.mxu0 %v1132
        %1191 = vmatprep.subr.mxu0 0.0
        %1192 = vmatpush1.msra.mxu0 %v1133
        %1193 = vmatprep.subr.mxu0 0.0
        %1194 = vmatpush1.msra.mxu0 %v1134
        %1195 = vmatprep.subr.mxu0 0.0
        %1196 = vmatpush1.msra.mxu0 %v1135
        %1197 = vmatprep.subr.mxu0 0.0
        %1198 = vmatpush1.msra.mxu0 %v1136
        %1199 = vmatprep.subr.mxu0 0.0
        %1200 = vmatpush1.msra.mxu0 %v1137
        %1201 = vmatprep.subr.mxu0 0.0
        %1202 = vmatpush1.msra.mxu0 %v1138
        %1203 = vmatprep.subr.mxu0 0.0
        %1204 = vmatpush1.msra.mxu0 %v1139
        %1205 = vmatprep.subr.mxu0 0.0
        %1206 = vmatpush1.msra.mxu0 %v1140
        %1207 = vmatprep.subr.mxu0 0.0
        %1208 = vmatpush1.msra.mxu0 %v1141
        %1209 = vmatprep.subr.mxu0 0.0
        %1210 = vmatpush1.msra.mxu0 %v1142
        %1211 = vmatprep.subr.mxu0 0.0
        %1212 = vmatpush1.msra.mxu0 %v1143
        %1213 = vmatprep.subr.mxu0 0.0
        %1214 = vmatpush1.msra.mxu0 %v1144
        %1215 = vmatprep.mubr.f32.mxu0 %v1112
        %1216 = vmatmul.mubr.f32.gmra.mrb[0].mxu0 %v1111
        %v1217 = vpop.f32.mrb[0].mxu0
        %v1218 = vadd.f32 %v1149, %v1217
        %v1219 = vpop.f32.mrb[0].mxu0
        %1220 = vdwg.mxu0
        %v1221 = vtanh.pop %v1218
        %v1222 = vld [vmem:[%s6] sm:$0xff]
        %v1223 = vld [vmem:[%s6 + $0x8] sm:$0xff]
        %v1224 = vld [vmem:[%s6 + $0x10] sm:$0xff]
        %v1225 = vld [vmem:[%s6 + $0x18] sm:$0xff]
        %v1226 = vld [vmem:[%s6 + $0x20] sm:$0xff]
        %v1227 = vld [vmem:[%s6 + $0x28] sm:$0xff]
        %v1228 = vld [vmem:[%s6 + $0x30] sm:$0xff]
        %v1229 = vld [vmem:[%s6 + $0x38] sm:$0xff]
        %s1230 = scalar_lea.vmem %s6, 64
        %v1231 = vld [vmem:[%s1230] sm:$0xff]
        %v1232 = vld [vmem:[%s1230 + $0x8] sm:$0xff]
        %v1233 = vld [vmem:[%s1230 + $0x10] sm:$0xff]
        %v1234 = vld [vmem:[%s1230 + $0x18] sm:$0xff]
        %v1235 = vld [vmem:[%s1230 + $0x20] sm:$0xff]
        %v1236 = vld [vmem:[%s1230 + $0x28] sm:$0xff]
        %v1237 = vld [vmem:[%s1230 + $0x30] sm:$0xff]
        %v1238 = vld [vmem:[%s1230 + $0x38] sm:$0xff]
        %v1240 = vrot.slane %v1221, 1
        %vm1241 = vcmask 523264
        %v1242 = vsel %vm1241, %v1240, 0
        %1244 = vmatprep.subr.mxu0 0.0
        %1245 = vmatpush1.msra.mxu0 %v1231
        %1246 = vmatprep.subr.mxu0 0.0
        %1247 = vmatpush1.msra.mxu0 %v1232
        %1248 = vmatprep.subr.mxu0 0.0
        %1249 = vmatpush1.msra.mxu0 %v1233
        %1250 = vmatprep.subr.mxu0 0.0
        %1251 = vmatpush1.msra.mxu0 %v1234
        %1252 = vmatprep.subr.mxu0 0.0
        %1253 = vmatpush1.msra.mxu0 %v1235
        %1254 = vmatprep.subr.mxu0 0.0
        %1255 = vmatpush1.msra.mxu0 %v1236
        %1256 = vmatprep.subr.mxu0 0.0
        %1257 = vmatpush1.msra.mxu0 %v1237
        %1258 = vmatprep.subr.mxu0 0.0
        %1259 = vmatpush1.msra.mxu0 %v1238
        %1260 = vmatprep.subr.mxu0 0.0
        %1261 = vmatpush1.msra.mxu0 0.0
        %1262 = vmatprep.subr.mxu0 0.0
        %1263 = vmatpush1.msra.mxu0 0.0
        %1264 = vmatprep.subr.mxu0 0.0
        %1265 = vmatpush1.msra.mxu0 0.0
        %1266 = vmatprep.subr.mxu0 0.0
        %1267 = vmatpush1.msra.mxu0 0.0
        %1268 = vmatprep.subr.mxu0 0.0
        %1269 = vmatpush1.msra.mxu0 0.0
        %1270 = vmatprep.subr.mxu0 0.0
        %1271 = vmatpush1.msra.mxu0 0.0
        %1272 = vmatprep.subr.mxu0 0.0
        %1273 = vmatpush1.msra.mxu0 0.0
        %1274 = vmatprep.subr.mxu0 0.0
        %1275 = vmatpush1.msra.mxu0 0.0
        %1276 = vmatprep.subr.mxu0 0.0
        %1277 = vmatpush1.msra.mxu0 0.0
        %1278 = vmatprep.subr.mxu0 0.0
        %1279 = vmatpush1.msra.mxu0 0.0
        %1280 = vmatprep.subr.mxu0 0.0
        %1281 = vmatpush1.msra.mxu0 0.0
        %1282 = vmatprep.subr.mxu0 0.0
        %1283 = vmatpush1.msra.mxu0 0.0
        %1284 = vmatprep.subr.mxu0 0.0
        %1285 = vmatpush1.msra.mxu0 0.0
        %1286 = vmatprep.subr.mxu0 0.0
        %1287 = vmatpush1.msra.mxu0 0.0
        %1288 = vmatprep.subr.mxu0 0.0
        %1289 = vmatpush1.msra.mxu0 0.0
        %1290 = vmatprep.subr.mxu0 0.0
        %1291 = vmatpush1.msra.mxu0 0.0
        %1292 = vmatprep.subr.mxu0 0.0
        %1293 = vmatpush1.msra.mxu0 0.0
        %1294 = vmatprep.subr.mxu0 0.0
        %1295 = vmatpush1.msra.mxu0 0.0
        %1296 = vmatprep.subr.mxu0 0.0
        %1297 = vmatpush1.msra.mxu0 0.0
        %1298 = vmatprep.subr.mxu0 0.0
        %1299 = vmatpush1.msra.mxu0 0.0
        %1300 = vmatprep.subr.mxu0 0.0
        %1301 = vmatpush1.msra.mxu0 0.0
        %1302 = vmatprep.subr.mxu0 0.0
        %1303 = vmatpush1.msra.mxu0 0.0
        %1304 = vmatprep.subr.mxu0 0.0
        %1305 = vmatpush1.msra.mxu0 0.0
        %1306 = vmatprep.subr.mxu0 0.0
        %1307 = vmatpush1.msra.mxu0 0.0
        %1308 = vmatprep.mubr.f32.mxu0 0.0
        %1309 = vmatmul.mubr.f32.gmra.mrb[0].mxu0 %v1242
        %v1310 = vpop.f32.mrb[0].mxu0
        %v1311 = vadd.f32 0.0, %v1310
        %v1312 = vpop.f32.mrb[0].mxu0
        %1313 = vdwg.mxu0
        %v1314 = vsel %vm1241, %v1221, 0
        %1316 = vmatprep.subr.mxu0 0.0
        %1317 = vmatpush1.msra.mxu0 %v1222
        %1318 = vmatprep.subr.mxu0 0.0
        %1319 = vmatpush1.msra.mxu0 %v1223
        %1320 = vmatprep.subr.mxu0 0.0
        %1321 = vmatpush1.msra.mxu0 %v1224
        %1322 = vmatprep.subr.mxu0 0.0
        %1323 = vmatpush1.msra.mxu0 %v1225
        %1324 = vmatprep.subr.mxu0 0.0
        %1325 = vmatpush1.msra.mxu0 %v1226
        %1326 = vmatprep.subr.mxu0 0.0
        %1327 = vmatpush1.msra.mxu0 %v1227
        %1328 = vmatprep.subr.mxu0 0.0
        %1329 = vmatpush1.msra.mxu0 %v1228
        %1330 = vmatprep.subr.mxu0 0.0
        %1331 = vmatpush1.msra.mxu0 %v1229
        %1332 = vmatprep.subr.mxu0 0.0
        %1333 = vmatpush1.msra.mxu0 0.0
        %1334 = vmatprep.subr.mxu0 0.0
        %1335 = vmatpush1.msra.mxu0 0.0
        %1336 = vmatprep.subr.mxu0 0.0
        %1337 = vmatpush1.msra.mxu0 0.0
        %1338 = vmatprep.subr.mxu0 0.0
        %1339 = vmatpush1.msra.mxu0 0.0
        %1340 = vmatprep.subr.mxu0 0.0
        %1341 = vmatpush1.msra.mxu0 0.0
        %1342 = vmatprep.subr.mxu0 0.0
        %1343 = vmatpush1.msra.mxu0 0.0
        %1344 = vmatprep.subr.mxu0 0.0
        %1345 = vmatpush1.msra.mxu0 0.0
        %1346 = vmatprep.subr.mxu0 0.0
        %1347 = vmatpush1.msra.mxu0 0.0
        %1348 = vmatprep.subr.mxu0 0.0
        %1349 = vmatpush1.msra.mxu0 0.0
        %1350 = vmatprep.subr.mxu0 0.0
        %1351 = vmatpush1.msra.mxu0 0.0
        %1352 = vmatprep.subr.mxu0 0.0
        %1353 = vmatpush1.msra.mxu0 0.0
        %1354 = vmatprep.subr.mxu0 0.0
        %1355 = vmatpush1.msra.mxu0 0.0
        %1356 = vmatprep.subr.mxu0 0.0
        %1357 = vmatpush1.msra.mxu0 0.0
        %1358 = vmatprep.subr.mxu0 0.0
        %1359 = vmatpush1.msra.mxu0 0.0
        %1360 = vmatprep.subr.mxu0 0.0
        %1361 = vmatpush1.msra.mxu0 0.0
        %1362 = vmatprep.subr.mxu0 0.0
        %1363 = vmatpush1.msra.mxu0 0.0
        %1364 = vmatprep.subr.mxu0 0.0
        %1365 = vmatpush1.msra.mxu0 0.0
        %1366 = vmatprep.subr.mxu0 0.0
        %1367 = vmatpush1.msra.mxu0 0.0
        %1368 = vmatprep.subr.mxu0 0.0
        %1369 = vmatpush1.msra.mxu0 0.0
        %1370 = vmatprep.subr.mxu0 0.0
        %1371 = vmatpush1.msra.mxu0 0.0
        %1372 = vmatprep.subr.mxu0 0.0
        %1373 = vmatpush1.msra.mxu0 0.0
        %1374 = vmatprep.subr.mxu0 0.0
        %1375 = vmatpush1.msra.mxu0 0.0
        %1376 = vmatprep.subr.mxu0 0.0
        %1377 = vmatpush1.msra.mxu0 0.0
        %1378 = vmatprep.subr.mxu0 0.0
        %1379 = vmatpush1.msra.mxu0 0.0
        %1380 = vmatprep.mubr.f32.mxu0 0.0
        %1381 = vmatmul.mubr.f32.gmra.mrb[0].mxu0 %v1314
        %v1382 = vpop.f32.mrb[0].mxu0
        %v1383 = vadd.f32 %v1311, %v1382
        %v1384 = vpop.f32.mrb[0].mxu0
        %1385 = vdwg.mxu0
        %s1386 = scalar_lea.vmem %s6, 128
        %v1387 = vld [vmem:[%s1386] sm:$0xff]
        %v1388 = vld [vmem:[%s1386 + $0x8] sm:$0xff]
        %v1389 = vld [vmem:[%s1386 + $0x10] sm:$0xff]
        %v1390 = vld [vmem:[%s1386 + $0x18] sm:$0xff]
        %v1391 = vld [vmem:[%s1386 + $0x20] sm:$0xff]
        %v1392 = vld [vmem:[%s1386 + $0x28] sm:$0xff]
        %v1393 = vld [vmem:[%s1386 + $0x30] sm:$0xff]
        %v1394 = vld [vmem:[%s1386 + $0x38] sm:$0xff]
        %v1395 = vrot.slane %v1221, 2
        %v1396 = vsel %vm1241, %v1395, 0
        %1398 = vmatprep.subr.mxu0 0.0
        %1399 = vmatpush1.msra.mxu0 %v1387
        %1400 = vmatprep.subr.mxu0 0.0
        %1401 = vmatpush1.msra.mxu0 %v1388
        %1402 = vmatprep.subr.mxu0 0.0
        %1403 = vmatpush1.msra.mxu0 %v1389
        %1404 = vmatprep.subr.mxu0 0.0
        %1405 = vmatpush1.msra.mxu0 %v1390
        %1406 = vmatprep.subr.mxu0 0.0
        %1407 = vmatpush1.msra.mxu0 %v1391
        %1408 = vmatprep.subr.mxu0 0.0
        %1409 = vmatpush1.msra.mxu0 %v1392
        %1410 = vmatprep.subr.mxu0 0.0
        %1411 = vmatpush1.msra.mxu0 %v1393
        %1412 = vmatprep.subr.mxu0 0.0
        %1413 = vmatpush1.msra.mxu0 %v1394
        %1414 = vmatprep.subr.mxu0 0.0
        %1415 = vmatpush1.msra.mxu0 0.0
        %1416 = vmatprep.subr.mxu0 0.0
        %1417 = vmatpush1.msra.mxu0 0.0
        %1418 = vmatprep.subr.mxu0 0.0
        %1419 = vmatpush1.msra.mxu0 0.0
        %1420 = vmatprep.subr.mxu0 0.0
        %1421 = vmatpush1.msra.mxu0 0.0
        %1422 = vmatprep.subr.mxu0 0.0
        %1423 = vmatpush1.msra.mxu0 0.0
        %1424 = vmatprep.subr.mxu0 0.0
        %1425 = vmatpush1.msra.mxu0 0.0
        %1426 = vmatprep.subr.mxu0 0.0
        %1427 = vmatpush1.msra.mxu0 0.0
        %1428 = vmatprep.subr.mxu0 0.0
        %1429 = vmatpush1.msra.mxu0 0.0
        %1430 = vmatprep.subr.mxu0 0.0
        %1431 = vmatpush1.msra.mxu0 0.0
        %1432 = vmatprep.subr.mxu0 0.0
        %1433 = vmatpush1.msra.mxu0 0.0
        %1434 = vmatprep.subr.mxu0 0.0
        %1435 = vmatpush1.msra.mxu0 0.0
        %1436 = vmatprep.subr.mxu0 0.0
        %1437 = vmatpush1.msra.mxu0 0.0
        %1438 = vmatprep.subr.mxu0 0.0
        %1439 = vmatpush1.msra.mxu0 0.0
        %1440 = vmatprep.subr.mxu0 0.0
        %1441 = vmatpush1.msra.mxu0 0.0
        %1442 = vmatprep.subr.mxu0 0.0
        %1443 = vmatpush1.msra.mxu0 0.0
        %1444 = vmatprep.subr.mxu0 0.0
        %1445 = vmatpush1.msra.mxu0 0.0
        %1446 = vmatprep.subr.mxu0 0.0
        %1447 = vmatpush1.msra.mxu0 0.0
        %1448 = vmatprep.subr.mxu0 0.0
        %1449 = vmatpush1.msra.mxu0 0.0
        %1450 = vmatprep.subr.mxu0 0.0
        %1451 = vmatpush1.msra.mxu0 0.0
        %1452 = vmatprep.subr.mxu0 0.0
        %1453 = vmatpush1.msra.mxu0 0.0
        %1454 = vmatprep.subr.mxu0 0.0
        %1455 = vmatpush1.msra.mxu0 0.0
        %1456 = vmatprep.subr.mxu0 0.0
        %1457 = vmatpush1.msra.mxu0 0.0
        %1458 = vmatprep.subr.mxu0 0.0
        %1459 = vmatpush1.msra.mxu0 0.0
        %1460 = vmatprep.subr.mxu0 0.0
        %1461 = vmatpush1.msra.mxu0 0.0
        %1462 = vmatprep.mubr.f32.mxu0 0.0
        %1463 = vmatmul.mubr.f32.gmra.mrb[0].mxu0 %v1396
        %v1464 = vpop.f32.mrb[0].mxu0
        %v1465 = vadd.f32 0.0, %v1464
        %v1466 = vpop.f32.mrb[0].mxu0
        %1467 = vdwg.mxu0
        %v1468 = vadd.f32 %v1383, %v1465
        %s1469 = scalar_lea.vmem %s6, 192
        %v1470 = vld [vmem:[%s1469] sm:$0xff]
        %v1471 = vld [vmem:[%s1469 + $0x8] sm:$0xff]
        %v1472 = vld [vmem:[%s1469 + $0x10] sm:$0xff]
        %v1473 = vld [vmem:[%s1469 + $0x18] sm:$0xff]
        %v1474 = vld [vmem:[%s1469 + $0x20] sm:$0xff]
        %v1475 = vld [vmem:[%s1469 + $0x28] sm:$0xff]
        %v1476 = vld [vmem:[%s1469 + $0x30] sm:$0xff]
        %v1477 = vld [vmem:[%s1469 + $0x38] sm:$0xff]
        %v1478 = vrot.slane %v1221, 3
        %v1479 = vsel %vm1241, %v1478, 0
        %1481 = vmatprep.subr.mxu0 0.0
        %1482 = vmatpush1.msra.mxu0 %v1470
        %1483 = vmatprep.subr.mxu0 0.0
        %1484 = vmatpush1.msra.mxu0 %v1471
        %1485 = vmatprep.subr.mxu0 0.0
        %1486 = vmatpush1.msra.mxu0 %v1472
        %1487 = vmatprep.subr.mxu0 0.0
        %1488 = vmatpush1.msra.mxu0 %v1473
        %1489 = vmatprep.subr.mxu0 0.0
        %1490 = vmatpush1.msra.mxu0 %v1474
        %1491 = vmatprep.subr.mxu0 0.0
        %1492 = vmatpush1.msra.mxu0 %v1475
        %1493 = vmatprep.subr.mxu0 0.0
        %1494 = vmatpush1.msra.mxu0 %v1476
        %1495 = vmatprep.subr.mxu0 0.0
        %1496 = vmatpush1.msra.mxu0 %v1477
        %1497 = vmatprep.subr.mxu0 0.0
        %1498 = vmatpush1.msra.mxu0 0.0
        %1499 = vmatprep.subr.mxu0 0.0
        %1500 = vmatpush1.msra.mxu0 0.0
        %1501 = vmatprep.subr.mxu0 0.0
        %1502 = vmatpush1.msra.mxu0 0.0
        %1503 = vmatprep.subr.mxu0 0.0
        %1504 = vmatpush1.msra.mxu0 0.0
        %1505 = vmatprep.subr.mxu0 0.0
        %1506 = vmatpush1.msra.mxu0 0.0
        %1507 = vmatprep.subr.mxu0 0.0
        %1508 = vmatpush1.msra.mxu0 0.0
        %1509 = vmatprep.subr.mxu0 0.0
        %1510 = vmatpush1.msra.mxu0 0.0
        %1511 = vmatprep.subr.mxu0 0.0
        %1512 = vmatpush1.msra.mxu0 0.0
        %1513 = vmatprep.subr.mxu0 0.0
        %1514 = vmatpush1.msra.mxu0 0.0
        %1515 = vmatprep.subr.mxu0 0.0
        %1516 = vmatpush1.msra.mxu0 0.0
        %1517 = vmatprep.subr.mxu0 0.0
        %1518 = vmatpush1.msra.mxu0 0.0
        %1519 = vmatprep.subr.mxu0 0.0
        %1520 = vmatpush1.msra.mxu0 0.0
        %1521 = vmatprep.subr.mxu0 0.0
        %1522 = vmatpush1.msra.mxu0 0.0
        %1523 = vmatprep.subr.mxu0 0.0
        %1524 = vmatpush1.msra.mxu0 0.0
        %1525 = vmatprep.subr.mxu0 0.0
        %1526 = vmatpush1.msra.mxu0 0.0
        %1527 = vmatprep.subr.mxu0 0.0
        %1528 = vmatpush1.msra.mxu0 0.0
        %1529 = vmatprep.subr.mxu0 0.0
        %1530 = vmatpush1.msra.mxu0 0.0
        %1531 = vmatprep.subr.mxu0 0.0
        %1532 = vmatpush1.msra.mxu0 0.0
        %1533 = vmatprep.subr.mxu0 0.0
        %1534 = vmatpush1.msra.mxu0 0.0
        %1535 = vmatprep.subr.mxu0 0.0
        %1536 = vmatpush1.msra.mxu0 0.0
        %1537 = vmatprep.subr.mxu0 0.0
        %1538 = vmatpush1.msra.mxu0 0.0
        %1539 = vmatprep.subr.mxu0 0.0
        %1540 = vmatpush1.msra.mxu0 0.0
        %1541 = vmatprep.subr.mxu0 0.0
        %1542 = vmatpush1.msra.mxu0 0.0
        %1543 = vmatprep.subr.mxu0 0.0
        %1544 = vmatpush1.msra.mxu0 0.0
        %1545 = vmatprep.mubr.f32.mxu0 0.0
        %1546 = vmatmul.mubr.f32.gmra.mrb[0].mxu0 %v1479
        %v1547 = vpop.f32.mrb[0].mxu0
        %v1548 = vadd.f32 0.0, %v1547
        %v1549 = vpop.f32.mrb[0].mxu0
        %1550 = vdwg.mxu0
        %v1551 = vadd.f32 %v1468, %v1548
        %s1552 = scalar_lea.vmem %s6, 256
        %v1553 = vld [vmem:[%s1552] sm:$0xff]
        %v1554 = vld [vmem:[%s1552 + $0x8] sm:$0xff]
        %v1555 = vld [vmem:[%s1552 + $0x10] sm:$0xff]
        %v1556 = vld [vmem:[%s1552 + $0x18] sm:$0xff]
        %v1557 = vld [vmem:[%s1552 + $0x20] sm:$0xff]
        %v1558 = vld [vmem:[%s1552 + $0x28] sm:$0xff]
        %v1559 = vld [vmem:[%s1552 + $0x30] sm:$0xff]
        %v1560 = vld [vmem:[%s1552 + $0x38] sm:$0xff]
        %v1561 = vrot.slane %v1221, 4
        %v1562 = vsel %vm1241, %v1561, 0
        %1564 = vmatprep.subr.mxu0 0.0
        %1565 = vmatpush1.msra.mxu0 %v1553
        %1566 = vmatprep.subr.mxu0 0.0
        %1567 = vmatpush1.msra.mxu0 %v1554
        %1568 = vmatprep.subr.mxu0 0.0
        %1569 = vmatpush1.msra.mxu0 %v1555
        %1570 = vmatprep.subr.mxu0 0.0
        %1571 = vmatpush1.msra.mxu0 %v1556
        %1572 = vmatprep.subr.mxu0 0.0
        %1573 = vmatpush1.msra.mxu0 %v1557
        %1574 = vmatprep.subr.mxu0 0.0
        %1575 = vmatpush1.msra.mxu0 %v1558
        %1576 = vmatprep.subr.mxu0 0.0
        %1577 = vmatpush1.msra.mxu0 %v1559
        %1578 = vmatprep.subr.mxu0 0.0
        %1579 = vmatpush1.msra.mxu0 %v1560
        %1580 = vmatprep.subr.mxu0 0.0
        %1581 = vmatpush1.msra.mxu0 0.0
        %1582 = vmatprep.subr.mxu0 0.0
        %1583 = vmatpush1.msra.mxu0 0.0
        %1584 = vmatprep.subr.mxu0 0.0
        %1585 = vmatpush1.msra.mxu0 0.0
        %1586 = vmatprep.subr.mxu0 0.0
        %1587 = vmatpush1.msra.mxu0 0.0
        %1588 = vmatprep.subr.mxu0 0.0
        %1589 = vmatpush1.msra.mxu0 0.0
        %1590 = vmatprep.subr.mxu0 0.0
        %1591 = vmatpush1.msra.mxu0 0.0
        %1592 = vmatprep.subr.mxu0 0.0
        %1593 = vmatpush1.msra.mxu0 0.0
        %1594 = vmatprep.subr.mxu0 0.0
        %1595 = vmatpush1.msra.mxu0 0.0
        %1596 = vmatprep.subr.mxu0 0.0
        %1597 = vmatpush1.msra.mxu0 0.0
        %1598 = vmatprep.subr.mxu0 0.0
        %1599 = vmatpush1.msra.mxu0 0.0
        %1600 = vmatprep.subr.mxu0 0.0
        %1601 = vmatpush1.msra.mxu0 0.0
        %1602 = vmatprep.subr.mxu0 0.0
        %1603 = vmatpush1.msra.mxu0 0.0
        %1604 = vmatprep.subr.mxu0 0.0
        %1605 = vmatpush1.msra.mxu0 0.0
        %1606 = vmatprep.subr.mxu0 0.0
        %1607 = vmatpush1.msra.mxu0 0.0
        %1608 = vmatprep.subr.mxu0 0.0
        %1609 = vmatpush1.msra.mxu0 0.0
        %1610 = vmatprep.subr.mxu0 0.0
        %1611 = vmatpush1.msra.mxu0 0.0
        %1612 = vmatprep.subr.mxu0 0.0
        %1613 = vmatpush1.msra.mxu0 0.0
        %1614 = vmatprep.subr.mxu0 0.0
        %1615 = vmatpush1.msra.mxu0 0.0
        %1616 = vmatprep.subr.mxu0 0.0
        %1617 = vmatpush1.msra.mxu0 0.0
        %1618 = vmatprep.subr.mxu0 0.0
        %1619 = vmatpush1.msra.mxu0 0.0
        %1620 = vmatprep.subr.mxu0 0.0
        %1621 = vmatpush1.msra.mxu0 0.0
        %1622 = vmatprep.subr.mxu0 0.0
        %1623 = vmatpush1.msra.mxu0 0.0
        %1624 = vmatprep.subr.mxu0 0.0
        %1625 = vmatpush1.msra.mxu0 0.0
        %1626 = vmatprep.subr.mxu0 0.0
        %1627 = vmatpush1.msra.mxu0 0.0
        %1628 = vmatprep.mubr.f32.mxu0 0.0
        %1629 = vmatmul.mubr.f32.gmra.mrb[0].mxu0 %v1562
        %v1630 = vpop.f32.mrb[0].mxu0
        %v1631 = vadd.f32 0.0, %v1630
        %v1632 = vpop.f32.mrb[0].mxu0
        %1633 = vdwg.mxu0
        %v1634 = vadd.f32 %v1551, %v1631
        %s1635 = scalar_lea.vmem %s6, 320
        %v1636 = vld [vmem:[%s1635] sm:$0xff]
        %v1637 = vld [vmem:[%s1635 + $0x8] sm:$0xff]
        %v1638 = vld [vmem:[%s1635 + $0x10] sm:$0xff]
        %v1639 = vld [vmem:[%s1635 + $0x18] sm:$0xff]
        %v1640 = vld [vmem:[%s1635 + $0x20] sm:$0xff]
        %v1641 = vld [vmem:[%s1635 + $0x28] sm:$0xff]
        %v1642 = vld [vmem:[%s1635 + $0x30] sm:$0xff]
        %v1643 = vld [vmem:[%s1635 + $0x38] sm:$0xff]
        %v1644 = vrot.slane %v1221, 5
        %v1645 = vsel %vm1241, %v1644, 0
        %1647 = vmatprep.subr.mxu0 0.0
        %1648 = vmatpush1.msra.mxu0 %v1636
        %1649 = vmatprep.subr.mxu0 0.0
        %1650 = vmatpush1.msra.mxu0 %v1637
        %1651 = vmatprep.subr.mxu0 0.0
        %1652 = vmatpush1.msra.mxu0 %v1638
        %1653 = vmatprep.subr.mxu0 0.0
        %1654 = vmatpush1.msra.mxu0 %v1639
        %1655 = vmatprep.subr.mxu0 0.0
        %1656 = vmatpush1.msra.mxu0 %v1640
        %1657 = vmatprep.subr.mxu0 0.0
        %1658 = vmatpush1.msra.mxu0 %v1641
        %1659 = vmatprep.subr.mxu0 0.0
        %1660 = vmatpush1.msra.mxu0 %v1642
        %1661 = vmatprep.subr.mxu0 0.0
        %1662 = vmatpush1.msra.mxu0 %v1643
        %1663 = vmatprep.subr.mxu0 0.0
        %1664 = vmatpush1.msra.mxu0 0.0
        %1665 = vmatprep.subr.mxu0 0.0
        %1666 = vmatpush1.msra.mxu0 0.0
        %1667 = vmatprep.subr.mxu0 0.0
        %1668 = vmatpush1.msra.mxu0 0.0
        %1669 = vmatprep.subr.mxu0 0.0
        %1670 = vmatpush1.msra.mxu0 0.0
        %1671 = vmatprep.subr.mxu0 0.0
        %1672 = vmatpush1.msra.mxu0 0.0
        %1673 = vmatprep.subr.mxu0 0.0
        %1674 = vmatpush1.msra.mxu0 0.0
        %1675 = vmatprep.subr.mxu0 0.0
        %1676 = vmatpush1.msra.mxu0 0.0
        %1677 = vmatprep.subr.mxu0 0.0
        %1678 = vmatpush1.msra.mxu0 0.0
        %1679 = vmatprep.subr.mxu0 0.0
        %1680 = vmatpush1.msra.mxu0 0.0
        %1681 = vmatprep.subr.mxu0 0.0
        %1682 = vmatpush1.msra.mxu0 0.0
        %1683 = vmatprep.subr.mxu0 0.0
        %1684 = vmatpush1.msra.mxu0 0.0
        %1685 = vmatprep.subr.mxu0 0.0
        %1686 = vmatpush1.msra.mxu0 0.0
        %1687 = vmatprep.subr.mxu0 0.0
        %1688 = vmatpush1.msra.mxu0 0.0
        %1689 = vmatprep.subr.mxu0 0.0
        %1690 = vmatpush1.msra.mxu0 0.0
        %1691 = vmatprep.subr.mxu0 0.0
        %1692 = vmatpush1.msra.mxu0 0.0
        %1693 = vmatprep.subr.mxu0 0.0
        %1694 = vmatpush1.msra.mxu0 0.0
        %1695 = vmatprep.subr.mxu0 0.0
        %1696 = vmatpush1.msra.mxu0 0.0
        %1697 = vmatprep.subr.mxu0 0.0
        %1698 = vmatpush1.msra.mxu0 0.0
        %1699 = vmatprep.subr.mxu0 0.0
        %1700 = vmatpush1.msra.mxu0 0.0
        %1701 = vmatprep.subr.mxu0 0.0
        %1702 = vmatpush1.msra.mxu0 0.0
        %1703 = vmatprep.subr.mxu0 0.0
        %1704 = vmatpush1.msra.mxu0 0.0
        %1705 = vmatprep.subr.mxu0 0.0
        %1706 = vmatpush1.msra.mxu0 0.0
        %1707 = vmatprep.subr.mxu0 0.0
        %1708 = vmatpush1.msra.mxu0 0.0
        %1709 = vmatprep.subr.mxu0 0.0
        %1710 = vmatpush1.msra.mxu0 0.0
        %1711 = vmatprep.mubr.f32.mxu0 0.0
        %1712 = vmatmul.mubr.f32.gmra.mrb[0].mxu0 %v1645
        %v1713 = vpop.f32.mrb[0].mxu0
        %v1714 = vadd.f32 0.0, %v1713
        %v1715 = vpop.f32.mrb[0].mxu0
        %1716 = vdwg.mxu0
        %v1717 = vadd.f32 %v1634, %v1714
        %s1718 = scalar_lea.vmem %s6, 384
        %v1719 = vld [vmem:[%s1718] sm:$0xff]
        %v1720 = vld [vmem:[%s1718 + $0x8] sm:$0xff]
        %v1721 = vld [vmem:[%s1718 + $0x10] sm:$0xff]
        %v1722 = vld [vmem:[%s1718 + $0x18] sm:$0xff]
        %v1723 = vld [vmem:[%s1718 + $0x20] sm:$0xff]
        %v1724 = vld [vmem:[%s1718 + $0x28] sm:$0xff]
        %v1725 = vld [vmem:[%s1718 + $0x30] sm:$0xff]
        %v1726 = vld [vmem:[%s1718 + $0x38] sm:$0xff]
        %v1727 = vrot.slane %v1221, 6
        %v1728 = vsel %vm1241, %v1727, 0
        %1730 = vmatprep.subr.mxu0 0.0
        %1731 = vmatpush1.msra.mxu0 %v1719
        %1732 = vmatprep.subr.mxu0 0.0
        %1733 = vmatpush1.msra.mxu0 %v1720
        %1734 = vmatprep.subr.mxu0 0.0
        %1735 = vmatpush1.msra.mxu0 %v1721
        %1736 = vmatprep.subr.mxu0 0.0
        %1737 = vmatpush1.msra.mxu0 %v1722
        %1738 = vmatprep.subr.mxu0 0.0
        %1739 = vmatpush1.msra.mxu0 %v1723
        %1740 = vmatprep.subr.mxu0 0.0
        %1741 = vmatpush1.msra.mxu0 %v1724
        %1742 = vmatprep.subr.mxu0 0.0
        %1743 = vmatpush1.msra.mxu0 %v1725
        %1744 = vmatprep.subr.mxu0 0.0
        %1745 = vmatpush1.msra.mxu0 %v1726
        %1746 = vmatprep.subr.mxu0 0.0
        %1747 = vmatpush1.msra.mxu0 0.0
        %1748 = vmatprep.subr.mxu0 0.0
        %1749 = vmatpush1.msra.mxu0 0.0
        %1750 = vmatprep.subr.mxu0 0.0
        %1751 = vmatpush1.msra.mxu0 0.0
        %1752 = vmatprep.subr.mxu0 0.0
        %1753 = vmatpush1.msra.mxu0 0.0
        %1754 = vmatprep.subr.mxu0 0.0
        %1755 = vmatpush1.msra.mxu0 0.0
        %1756 = vmatprep.subr.mxu0 0.0
        %1757 = vmatpush1.msra.mxu0 0.0
        %1758 = vmatprep.subr.mxu0 0.0
        %1759 = vmatpush1.msra.mxu0 0.0
        %1760 = vmatprep.subr.mxu0 0.0
        %1761 = vmatpush1.msra.mxu0 0.0
        %1762 = vmatprep.subr.mxu0 0.0
        %1763 = vmatpush1.msra.mxu0 0.0
        %1764 = vmatprep.subr.mxu0 0.0
        %1765 = vmatpush1.msra.mxu0 0.0
        %1766 = vmatprep.subr.mxu0 0.0
        %1767 = vmatpush1.msra.mxu0 0.0
        %1768 = vmatprep.subr.mxu0 0.0
        %1769 = vmatpush1.msra.mxu0 0.0
        %1770 = vmatprep.subr.mxu0 0.0
        %1771 = vmatpush1.msra.mxu0 0.0
        %1772 = vmatprep.subr.mxu0 0.0
        %1773 = vmatpush1.msra.mxu0 0.0
        %1774 = vmatprep.subr.mxu0 0.0
        %1775 = vmatpush1.msra.mxu0 0.0
        %1776 = vmatprep.subr.mxu0 0.0
        %1777 = vmatpush1.msra.mxu0 0.0
        %1778 = vmatprep.subr.mxu0 0.0
        %1779 = vmatpush1.msra.mxu0 0.0
        %1780 = vmatprep.subr.mxu0 0.0
        %1781 = vmatpush1.msra.mxu0 0.0
        %1782 = vmatprep.subr.mxu0 0.0
        %1783 = vmatpush1.msra.mxu0 0.0
        %1784 = vmatprep.subr.mxu0 0.0
        %1785 = vmatpush1.msra.mxu0 0.0
        %1786 = vmatprep.subr.mxu0 0.0
        %1787 = vmatpush1.msra.mxu0 0.0
        %1788 = vmatprep.subr.mxu0 0.0
        %1789 = vmatpush1.msra.mxu0 0.0
        %1790 = vmatprep.subr.mxu0 0.0
        %1791 = vmatpush1.msra.mxu0 0.0
        %1792 = vmatprep.subr.mxu0 0.0
        %1793 = vmatpush1.msra.mxu0 0.0
        %1794 = vmatprep.mubr.f32.mxu0 0.0
        %1795 = vmatmul.mubr.f32.gmra.mrb[0].mxu0 %v1728
        %v1796 = vpop.f32.mrb[0].mxu0
        %v1797 = vadd.f32 0.0, %v1796
        %v1798 = vpop.f32.mrb[0].mxu0
        %1799 = vdwg.mxu0
        %v1800 = vadd.f32 %v1717, %v1797
        %s1801 = scalar_lea.vmem %s6, 448
        %v1802 = vld [vmem:[%s1801] sm:$0xff]
        %v1803 = vld [vmem:[%s1801 + $0x8] sm:$0xff]
        %v1804 = vld [vmem:[%s1801 + $0x10] sm:$0xff]
        %v1805 = vld [vmem:[%s1801 + $0x18] sm:$0xff]
        %v1806 = vld [vmem:[%s1801 + $0x20] sm:$0xff]
        %v1807 = vld [vmem:[%s1801 + $0x28] sm:$0xff]
        %v1808 = vld [vmem:[%s1801 + $0x30] sm:$0xff]
        %v1809 = vld [vmem:[%s1801 + $0x38] sm:$0xff]
        %v1810 = vrot.slane %v1221, 7
        %v1811 = vsel %vm1241, %v1810, 0
        %1813 = vmatprep.subr.mxu0 0.0
        %1814 = vmatpush1.msra.mxu0 %v1802
        %1815 = vmatprep.subr.mxu0 0.0
        %1816 = vmatpush1.msra.mxu0 %v1803
        %1817 = vmatprep.subr.mxu0 0.0
        %1818 = vmatpush1.msra.mxu0 %v1804
        %1819 = vmatprep.subr.mxu0 0.0
        %1820 = vmatpush1.msra.mxu0 %v1805
        %1821 = vmatprep.subr.mxu0 0.0
        %1822 = vmatpush1.msra.mxu0 %v1806
        %1823 = vmatprep.subr.mxu0 0.0
        %1824 = vmatpush1.msra.mxu0 %v1807
        %1825 = vmatprep.subr.mxu0 0.0
        %1826 = vmatpush1.msra.mxu0 %v1808
        %1827 = vmatprep.subr.mxu0 0.0
        %1828 = vmatpush1.msra.mxu0 %v1809
        %1829 = vmatprep.subr.mxu0 0.0
        %1830 = vmatpush1.msra.mxu0 0.0
        %1831 = vmatprep.subr.mxu0 0.0
        %1832 = vmatpush1.msra.mxu0 0.0
        %1833 = vmatprep.subr.mxu0 0.0
        %1834 = vmatpush1.msra.mxu0 0.0
        %1835 = vmatprep.subr.mxu0 0.0
        %1836 = vmatpush1.msra.mxu0 0.0
        %1837 = vmatprep.subr.mxu0 0.0
        %1838 = vmatpush1.msra.mxu0 0.0
        %1839 = vmatprep.subr.mxu0 0.0
        %1840 = vmatpush1.msra.mxu0 0.0
        %1841 = vmatprep.subr.mxu0 0.0
        %1842 = vmatpush1.msra.mxu0 0.0
        %1843 = vmatprep.subr.mxu0 0.0
        %1844 = vmatpush1.msra.mxu0 0.0
        %1845 = vmatprep.subr.mxu0 0.0
        %1846 = vmatpush1.msra.mxu0 0.0
        %1847 = vmatprep.subr.mxu0 0.0
        %1848 = vmatpush1.msra.mxu0 0.0
        %1849 = vmatprep.subr.mxu0 0.0
        %1850 = vmatpush1.msra.mxu0 0.0
        %1851 = vmatprep.subr.mxu0 0.0
        %1852 = vmatpush1.msra.mxu0 0.0
        %1853 = vmatprep.subr.mxu0 0.0
        %1854 = vmatpush1.msra.mxu0 0.0
        %1855 = vmatprep.subr.mxu0 0.0
        %1856 = vmatpush1.msra.mxu0 0.0
        %1857 = vmatprep.subr.mxu0 0.0
        %1858 = vmatpush1.msra.mxu0 0.0
        %1859 = vmatprep.subr.mxu0 0.0
        %1860 = vmatpush1.msra.mxu0 0.0
        %1861 = vmatprep.subr.mxu0 0.0
        %1862 = vmatpush1.msra.mxu0 0.0
        %1863 = vmatprep.subr.mxu0 0.0
        %1864 = vmatpush1.msra.mxu0 0.0
        %1865 = vmatprep.subr.mxu0 0.0
        %1866 = vmatpush1.msra.mxu0 0.0
        %1867 = vmatprep.subr.mxu0 0.0
        %1868 = vmatpush1.msra.mxu0 0.0
        %1869 = vmatprep.subr.mxu0 0.0
        %1870 = vmatpush1.msra.mxu0 0.0
        %1871 = vmatprep.subr.mxu0 0.0
        %1872 = vmatpush1.msra.mxu0 0.0
        %1873 = vmatprep.subr.mxu0 0.0
        %1874 = vmatpush1.msra.mxu0 0.0
        %1875 = vmatprep.subr.mxu0 0.0
        %1876 = vmatpush1.msra.mxu0 0.0
        %1877 = vmatprep.mubr.f32.mxu0 0.0
        %1878 = vmatmul.mubr.f32.gmra.mrb[0].mxu0 %v1811
        %v1879 = vpop.f32.mrb[0].mxu0
        %v1880 = vadd.f32 0.0, %v1879
        %v1881 = vpop.f32.mrb[0].mxu0
        %1882 = vdwg.mxu0
        %v1883 = vadd.f32 %v1800, %v1880
        %v1884 = vld [vmem:[%s7] sm:$0x1]
        %v1885 = vadd.f32 %v1883, %v1884
        %v1886 = vtanh.pop %v1885
        %v1887 = vld [vmem:[%s8] sm:$0xff]
        %v1888 = vld [vmem:[%s8 + $0x8] sm:$0xff]
        %v1889 = vld [vmem:[%s8 + $0x10] sm:$0xff]
        %v1890 = vld [vmem:[%s8 + $0x18] sm:$0xff]
        %v1891 = vld [vmem:[%s9] sm:$0x1]
        %vm1892 = vcmask 261120
        %v1894 = vsel %vm1892, %v1886, 0
        %1896 = vmatprep.subr.mxu0 0.0
        %1897 = vmatpush1.msra.mxu0 %v1887
        %1898 = vmatprep.subr.mxu0 0.0
        %1899 = vmatpush1.msra.mxu0 %v1888
        %1900 = vmatprep.subr.mxu0 0.0
        %1901 = vmatpush1.msra.mxu0 %v1889
        %1902 = vmatprep.subr.mxu0 0.0
        %1903 = vmatpush1.msra.mxu0 %v1890
        %1904 = vmatprep.subr.mxu0 0.0
        %1905 = vmatpush1.msra.mxu0 0.0
        %1906 = vmatprep.subr.mxu0 0.0
        %1907 = vmatpush1.msra.mxu0 0.0
        %1908 = vmatprep.subr.mxu0 0.0
        %1909 = vmatpush1.msra.mxu0 0.0
        %1910 = vmatprep.subr.mxu0 0.0
        %1911 = vmatpush1.msra.mxu0 0.0
        %1912 = vmatprep.subr.mxu0 0.0
        %1913 = vmatpush1.msra.mxu0 0.0
        %1914 = vmatprep.subr.mxu0 0.0
        %1915 = vmatpush1.msra.mxu0 0.0
        %1916 = vmatprep.subr.mxu0 0.0
        %1917 = vmatpush1.msra.mxu0 0.0
        %1918 = vmatprep.subr.mxu0 0.0
        %1919 = vmatpush1.msra.mxu0 0.0
        %1920 = vmatprep.subr.mxu0 0.0
        %1921 = vmatpush1.msra.mxu0 0.0
        %1922 = vmatprep.subr.mxu0 0.0
        %1923 = vmatpush1.msra.mxu0 0.0
        %1924 = vmatprep.subr.mxu0 0.0
        %1925 = vmatpush1.msra.mxu0 0.0
        %1926 = vmatprep.subr.mxu0 0.0
        %1927 = vmatpush1.msra.mxu0 0.0
        %1928 = vmatprep.subr.mxu0 0.0
        %1929 = vmatpush1.msra.mxu0 0.0
        %1930 = vmatprep.subr.mxu0 0.0
        %1931 = vmatpush1.msra.mxu0 0.0
        %1932 = vmatprep.subr.mxu0 0.0
        %1933 = vmatpush1.msra.mxu0 0.0
        %1934 = vmatprep.subr.mxu0 0.0
        %1935 = vmatpush1.msra.mxu0 0.0
        %1936 = vmatprep.subr.mxu0 0.0
        %1937 = vmatpush1.msra.mxu0 0.0
        %1938 = vmatprep.subr.mxu0 0.0
        %1939 = vmatpush1.msra.mxu0 0.0
        %1940 = vmatprep.subr.mxu0 0.0
        %1941 = vmatpush1.msra.mxu0 0.0
        %1942 = vmatprep.subr.mxu0 0.0
        %1943 = vmatpush1.msra.mxu0 0.0
        %1944 = vmatprep.subr.mxu0 0.0
        %1945 = vmatpush1.msra.mxu0 0.0
        %1946 = vmatprep.subr.mxu0 0.0
        %1947 = vmatpush1.msra.mxu0 0.0
        %1948 = vmatprep.subr.mxu0 0.0
        %1949 = vmatpush1.msra.mxu0 0.0
        %1950 = vmatprep.subr.mxu0 0.0
        %1951 = vmatpush1.msra.mxu0 0.0
        %1952 = vmatprep.subr.mxu0 0.0
        %1953 = vmatpush1.msra.mxu0 0.0
        %1954 = vmatprep.subr.mxu0 0.0
        %1955 = vmatpush1.msra.mxu0 0.0
        %1956 = vmatprep.subr.mxu0 0.0
        %1957 = vmatpush1.msra.mxu0 0.0
        %1958 = vmatprep.subr.mxu0 0.0
        %1959 = vmatpush1.msra.mxu0 0.0
        %1960 = vmatprep.mubr.f32.mxu0 0.0
        %1961 = vmatmul.mubr.f32.gmra.mrb[0].mxu0 %v1894
        %v1962 = vpop.f32.mrb[0].mxu0
        %v1963 = vadd.f32 %v1891, %v1962
        %v1964 = vpop.f32.mrb[0].mxu0
        %1965 = vdwg.mxu0
        %vm1966 = vcmask 8192
        %v1967 = vsel %vm1966, %v1963, -inf
        %1968 = vmax.xlane.f32.xlu0 %v1967
        %v1969 = vpop.xlane.xlu0 %1968
        %v1970 = vsub.f32 %v1963, %v1969
        %v1971 = vmul.f32 %v1970, 1.442695
        %v1972 = vpow.pop %v1971
        %v1973 = vsel %vm1966, %v1972, 0.0
        %1974 = vadd.xlane.f32.xlu0 %v1973
        %v1975 = vpop.xlane.xlu0 %1974
        %v1976 = vlog2.pop %v1975
        %v1977 = vmul.f32 %v1976, 0.6931472
        %v1978 = vsub.f32 %v1970, %v1977
        %1979 = vst.msk [vmem:[%s351] sm:$0x1] %vm1966, %v1978
        %s1980 = sand.u32 %s247, 1
        %s1981 = scalar_lea.sflag [#allocation3], %s1980
        %s1982 = sand.u32 %s247, 1
        %s1983 = scalar_lea.vmem [#allocation2], %s1982
        // Predicated region
        $region61: #{convnet_forward.1} parent=59 // pred_check
          %p1984 = pneg %p257
        $region62: #{convnet_forward.1} parent=59 // pred_check_branch
          %1986 = sbr.rel (%p1984) target = $region64
        $region63: #{convnet_forward.1} parent=59 // pred_region
          %s1988 = ssub.s32 16, 16
          %1989 = vsyncadd %s1981, %s1988
          %s1990 = smul.addr %s24, 16
          %s1991 = scalar_lea.hbm %s10, %s1990
          %s1993 = sshll.u32 %s1983, 4
          %s1994 = int_to_ptr.vmem [resolvable:$true] %s1993
          %1996 = dma.vmem_to_hbm [thread:$0]  %s1994, 16, %s1991, %s1981
        $region64: #{convnet_forward.1} parent=59 // pred_fallthru
          _
      $region60: #{convnet_forward.1} parent=5 // pred_fallthru
        _
      %p1997 = scmp.le.s32.totalorder 2, %s19
      // Predicated region
      $region65: #{convnet_forward.1} parent=5 // pred_check
        %p1998 = pneg %p1997
      $region66: #{convnet_forward.1} parent=5 // pred_check_branch
        %2000 = sbr.rel (%p1998) target = $region68
      $region67: #{convnet_forward.1} parent=5 // pred_region
        %s2001 = ssub.s32 %s19, 2
        // Predicated region
        $region69: #{convnet_forward.1} parent=67 // pred_check
          %p2002 = pneg %p263
        $region70: #{convnet_forward.1} parent=67 // pred_check_branch
          %2004 = sbr.rel (%p2002) target = $region72
        $region71: #{convnet_forward.1} parent=67 // pred_region
          %s2005 = sand.u32 %s248, 1
          %s2006 = scalar_lea.sflag [#allocation3], %s2005
          %s2007 = sand.u32 %s248, 1
          %s2008 = scalar_lea.vmem [#allocation2], %s2007
          %2009 = dma.done %s2006, 16
        $region72: #{convnet_forward.1} parent=67 // pred_fallthru
          _
      $region68: #{convnet_forward.1} parent=5 // pred_fallthru
        _
    $region6: #{convnet_forward.1} parent=1 // loop_footer
      %s23 = sadd.s32 1, %s19
    $region7: #{convnet_forward.1} parent=1 // loop_footer_branch
      %18 = sbr.rel target = $region3
    $region8: #{convnet_forward.1} parent=1 // loop_exit
      _
    %2010 = vsyncpa [#allocation3], 1
    %s2011 = scalar_lea.sflag [#allocation3], 1
    %2012 = vsyncpa %s2011, 1

</llo_original>
